<compile_context>
chip_gen: v6e
topology: v6e:2x2x1
jax: 0.10.0
libtpu: 0.0.40
codegen_flags: <defaults>
</compile_context>

<pallas_src>
import functools

import jax
import jax.numpy as jnp
from jax import lax
from jax.experimental import pallas as pl
from jax.experimental.pallas import tpu as pltpu

LANES = 128        # feature / hidden dims are zero-padded to this (sublane axis)
_STATE_SUB = 0     # sublane 0 = state, 1 = t, 2 = init_cond, 3 = admin, 4.. = cov
_TIME_SUB = 1
_INIT_SUB = 2
_ADMIN_SUB = 3
_COV_SUB = 4


def _softplus(x):
    # matches torch.nn.Softplus (beta=1): log(1 + exp(x)), numerically stable, kept in f32
    return jnp.logaddexp(x, 0.0)


def _round_up(n, m):
    return -(-n // m) * m


# --------------------------------------------------------------------------------------
# kernels (feature-major: activations are (128, batch_tile) f32 tiles)
# --------------------------------------------------------------------------------------

def _mlp_cols(h, w_ref, b_ref, n_layers):
    """[Linear -> Softplus]*(n_layers-1) -> Linear.

    h: (128, TT) f32.  w_ref[l]: (128, 128) stored (out, in) in the compute dtype (bf16).
    Activations are cast to the weight dtype at each dot; accumulation stays f32 on the MXU.
    """
    cdt = w_ref.dtype
    for l in range(n_layers):
        h = jnp.dot(w_ref[l], h.astype(cdt), preferred_element_type=jnp.float32) + b_ref[l]
        if l < n_layers - 1:
            h = _softplus(h)
    return h  # sublane 0 holds the scalar output per batch lane


def _make_rhs_kernel(n_layers):
    """Batched RHS evaluation: one lane-tile of (t, state) columns -> one (1, TT) output row."""
    def kernel(w_ref, b_ref, sr_ref, t_ref, s_ref, o_ref):
        tt = s_ref.shape[1]
        sub = lax.broadcasted_iota(jnp.int32, (LANES, tt), 0)
        x = (jnp.where(sub == _STATE_SUB, s_ref[...], 0.0)
             + jnp.where(sub == _TIME_SUB, t_ref[...], 0.0)
             + sr_ref[...])                                   # (128,1) lane-broadcast
        h = _mlp_cols(x, w_ref, b_ref, n_layers)
        o_ref[...] = h[0:1, :]                                # lane-dense scalar outputs
    return kernel


def _make_euler_kernel(n_layers, chunk_steps):
    """One step-chunk of fixed-step Euler for one trajectory lane-tile (state carried in scratch)."""
    def kernel(ts_ref, w_ref, b_ref, sr_ref, s0_ref, o_ref, s_scr):
        tt = s_scr.shape[1]
        c = pl.program_id(1)                                  # step-chunk index ("arbitrary")

        t0 = ts_ref[0]
        dt = ts_ref[1]

        # ---- loop-invariant tiles, hoisted (JAX does not CSE broadcast_in_dim) ----
        sub = lax.broadcasted_iota(jnp.int32, (LANES, tt), 0)
        t_mask = (sub == _TIME_SUB).astype(jnp.float32)
        static_b = sr_ref[...] + t_mask * t0                  # (128, tt): static feats + t0 lane
        tmask_dt = t_mask * dt                                # adds dt*step into the t sublane
        dstate_dt = (sub == _STATE_SUB).astype(jnp.float32) * dt   # Euler update, sublane 0 only

        @pl.when(c == 0)
        def _():  # fresh trajectory tile: state in sublane 0, zeros elsewhere
            s_scr[...] = jnp.where(sub == _STATE_SUB, s0_ref[...], 0.0)

        step0 = c * chunk_steps

        @pl.loop(0, chunk_steps)
        def _step(i):
            gstep = (step0 + i).astype(jnp.float32)
            x = s_scr[...] + static_b + tmask_dt * gstep      # full feature tile, no re-broadcast
            h = _mlp_cols(x, w_ref, b_ref, n_layers)
            s_new = s_scr[...] + dstate_dt * h                # VPU select, no cross-lane reduce
            s_scr[...] = s_new
            o_ref[pl.ds(i, 1), :] = s_new[0:1, :]             # lane-dense trajectory row
        # TODO(synk): for very small trajectory tiles a weight-stationary MXU schedule
        # (pltpu.matmul_push_rhs/acc_lhs/pop) or 2-way trajectory interleave would help further.
    return kernel


# --------------------------------------------------------------------------------------
# jitted wrappers (jit boundary covers padding / feature prep + the pallas_call)
# --------------------------------------------------------------------------------------

def _build_static_col(init_cond, admin, cov):
    col = jnp.zeros((LANES, 1), jnp.float32)
    col = col.at[_INIT_SUB, 0].set(init_cond.astype(jnp.float32).reshape(-1)[0])
    col = col.at[_ADMIN_SUB, 0].set(admin.astype(jnp.float32).reshape(-1)[0])
    n_cov = cov.shape[0]
    if n_cov > 0:
        col = col.at[_COV_SUB:_COV_SUB + n_cov, 0].set(cov.astype(jnp.float32))
    return col


def _pick_tile(b_pad):
    """Large lane tiles (128-512); keep >=2 grid tiles when enough columns (2 TCs on v7x)."""
    if b_pad <= LANES:
        return LANES
    return min(512, max(LANES, _round_up(b_pad // 2, LANES)))


@jax.jit
def _node_rhs_batch(W, B, init_cond, admin, cov, t_vec, state_vec):
    f32 = jnp.float32
    n_layers = W.shape[0]
    t_vec = t_vec.astype(f32).reshape(-1)
    state_vec = state_vec.astype(f32).reshape(-1)
    bn = state_vec.shape[0]

    b_pad = _round_up(bn, LANES)
    tile_b = _pick_tile(b_pad)
    b_pad = _round_up(b_pad, tile_b)
    n_tiles = b_pad // tile_b

    static_col = _build_static_col(init_cond, admin, cov)
    t_row = jnp.zeros((1, b_pad), f32).at[0, :bn].set(t_vec)
    s_row = jnp.zeros((1, b_pad), f32).at[0, :bn].set(state_vec)

    out = pl.pallas_call(
        _make_rhs_kernel(n_layers),
        out_shape=jax.ShapeDtypeStruct((1, b_pad), f32),
        grid=(n_tiles,),
        in_specs=[
            pl.BlockSpec((n_layers, LANES, LANES), lambda i: (0, 0, 0)),  # weights resident
            pl.BlockSpec((n_layers, LANES, 1), lambda i: (0, 0, 0)),      # biases resident
            pl.BlockSpec((LANES, 1), lambda i: (0, 0)),                   # static features resident
            pl.BlockSpec((1, tile_b), lambda i: (0, i)),                  # t per lane
            pl.BlockSpec((1, tile_b), lambda i: (0, i)),                  # state per lane
        ],
        out_specs=pl.BlockSpec((1, tile_b), lambda i: (0, i)),            # lane-dense output row
        compiler_params=pltpu.CompilerParams(dimension_semantics=("parallel",)),
    )(W, B, static_col, t_row, s_row)
    return out[0, :bn]


@functools.partial(jax.jit, static_argnames=("n_steps",))
def _node_integrate_euler(W, B, init_cond, admin, cov, state0, t0, dt, *, n_steps):
    f32 = jnp.float32
    n_layers = W.shape[0]
    state0 = state0.astype(f32).reshape(-1)
    bn = state0.shape[0]

    tb = _round_up(bn, LANES)                 # trajectories along lanes
    tt = _pick_tile(tb)
    tb = _round_up(tb, tt)
    n_traj_tiles = tb // tt

    chunk = min(256, _round_up(n_steps, 8))   # step-chunk grid axis bounds VMEM for long runs
    n_steps_pad = _round_up(n_steps, chunk)
    n_chunks = n_steps_pad // chunk

    static_col = _build_static_col(init_cond, admin, cov)
    s0_row = jnp.zeros((1, tb), f32).at[0, :bn].set(state0)
    ts = jnp.stack([jnp.asarray(t0, f32).reshape(()), jnp.asarray(dt, f32).reshape(())])

    traj = pl.pallas_call(
        _make_euler_kernel(n_layers, chunk),
        out_shape=jax.ShapeDtypeStruct((n_steps_pad, tb), f32),
        grid=(n_traj_tiles, n_chunks),
        in_specs=[
            pl.BlockSpec(memory_space=pltpu.MemorySpace.SMEM),                 # [t0, dt] scalars
            pl.BlockSpec((n_layers, LANES, LANES), lambda j, c: (0, 0, 0)),    # weights resident
            pl.BlockSpec((n_layers, LANES, 1), lambda j, c: (0, 0, 0)),        # biases resident
            pl.BlockSpec((LANES, 1), lambda j, c: (0, 0)),                     # static features
            pl.BlockSpec((1, tt), lambda j, c: (0, j)),                        # initial states
        ],
        out_specs=pl.BlockSpec((chunk, tt), lambda j, c: (c, j)),              # lane-dense chunks
        scratch_shapes=[pltpu.VMEM((LANES, tt), f32)],                         # running state tile
        compiler_params=pltpu.CompilerParams(
            dimension_semantics=("parallel", "arbitrary"),
            vmem_limit_bytes=32 * 1024 * 1024),
    )(ts, W, B, static_col, s0_row)
    return traj[:n_steps, :bn]                # (n_steps, bn)


# --------------------------------------------------------------------------------------
# parameter padding (transposed layout: (out, in) zero-padded to (128, 128))
# --------------------------------------------------------------------------------------

def _pad_mat_T(w, dtype):
    # w is stored (in_features, out_features); pad its transpose. Zero padding is load-bearing:
    # columns >= prev fan_out must stay zero so softplus(0)=log2 garbage sublanes are annihilated.
    out = jnp.zeros((LANES, LANES), dtype)
    return out.at[: w.shape[1], : w.shape[0]].set(w.T.astype(dtype))


def _pad_bias_col(b):
    out = jnp.zeros((LANES, 1), jnp.float32)
    return out.at[: b.shape[0], 0].set(b.astype(jnp.float32))


# --------------------------------------------------------------------------------------
# module wrapper
# --------------------------------------------------------------------------------------

class NodePallas:
    """JAX/Pallas re-implementation of models.NODE (forward path, net_c)."""

    def __init__(self, dim_c, dim_V=None, n_cov=0, key=jax.random.PRNGKey(0),
                 compute_dtype=jnp.bfloat16):
        self.dim_c = tuple(dim_c)
        self.dim_V = tuple(dim_V) if dim_V is not None else None
        self.n_cov = int(n_cov)
        self.include_cov = dim_V is not None
        self.compute_dtype = compute_dtype    # matmul inputs; accumulation stays f32

        in_features = 4 + self.n_cov if self.include_cov else 4
        dims = [in_features] + list(self.dim_c) + [1]
        if max(dims) > LANES:
            raise ValueError(f"all layer widths must be <= {LANES}, got {dims}")
        self.n_layers = len(dims) - 1

        # torch.nn.Linear-style init: U(-1/sqrt(fan_in), 1/sqrt(fan_in)); stored (in, out) layout.
        weights, biases = [], []
        for i in range(self.n_layers):
            key, kw, kb = jax.random.split(key, 3)
            fan_in, fan_out = dims[i], dims[i + 1]
            bound = float(fan_in) ** -0.5
            weights.append(jax.random.uniform(kw, (fan_in, fan_out), jnp.float32, -bound, bound))
            biases.append(jax.random.uniform(kb, (fan_out,), jnp.float32, -bound, bound))
        self.weights = weights
        self.biases = biases
        self._pack_params()

        if not self.include_cov:
            self.V = jnp.array([1.0], jnp.float32)
        # TODO(synk): net_V (covariates -> volume) is only used by train_synthetic(), not by
        # forward(); not ported.

        self.init_cond = jnp.zeros((1,), jnp.float32)
        self.admin = jnp.zeros((1,), jnp.float32)
        self.cov = jnp.zeros((self.n_cov if self.include_cov else 0,), jnp.float32)

    # ---- parameter handling (padded copies kept in sync with the raw ones) ----
    def _pack_params(self):
        self.W_pad = jnp.stack([_pad_mat_T(w, self.compute_dtype) for w in self.weights])
        self.B_pad = jnp.stack([_pad_bias_col(b) for b in self.biases])

    def set_weights(self, weights, biases):
        self.weights = [jnp.asarray(w, jnp.float32) for w in weights]
        self.biases = [jnp.asarray(b, jnp.float32) for b in biases]
        self._pack_params()

    # ---- mirrors of the PyTorch setter methods (traceable, no host float() syncs) ----
    def init_dose(self, init):
        self.init_cond = jnp.reshape(jnp.asarray(init, jnp.float32), (1,))

    def get_admin(self, n_admin):
        self.admin = jnp.reshape(jnp.asarray(n_admin, jnp.float32), (1,)) / 10.0

    def get_cov(self, cov):
        self.cov = jnp.asarray(cov, jnp.float32).reshape(-1)

    # ---- forward paths ----
    def forward(self, t, state):
        """net_c(concat([state, t, init_cond, admin, cov])); returns shape (1,).

        Matches PyTorch NODE.forward exactly only for a length-1 state (scalar ODE).
        """
        state_vec = jnp.asarray(state, jnp.float32).reshape(-1)
        if state_vec.shape[0] != 1:
            raise ValueError("NODE.forward expects a length-1 state; use forward_batch "
                             "to evaluate many independent scalar states.")
        t_vec = jnp.broadcast_to(jnp.asarray(t, jnp.float32).reshape(-1), state_vec.shape)
        return _node_rhs_batch(self.W_pad, self.B_pad, self.init_cond, self.admin, self.cov,
                               t_vec, state_vec)

    def forward_batch(self, t, state):
        """Evaluate the RHS for many independent (t, state) pairs in one pallas_call."""
        state_vec = jnp.asarray(state, jnp.float32).reshape(-1)
        t_vec = jnp.broadcast_to(jnp.asarray(t, jnp.float32).reshape(-1), state_vec.shape)
        return _node_rhs_batch(self.W_pad, self.B_pad, self.init_cond, self.admin, self.cov,
                               t_vec, state_vec)

    def integrate_euler(self, state0, t0, dt, n_steps):
        """Fixed-step explicit Euler of ds/dt = net_c([s, t, ...]) fully inside one pallas_call."""
        # TODO(synk): torchdiffeq's adaptive dopri5 is not ported; fixed-step Euler demonstrates
        # the in-kernel integration loop with VMEM-resident weights.
        state0 = jnp.asarray(state0, jnp.float32).reshape(-1)
        return _node_integrate_euler(self.W_pad, self.B_pad, self.init_cond, self.admin, self.cov,
                                     state0, jnp.asarray(t0, jnp.float32),
                                     jnp.asarray(dt, jnp.float32), n_steps=int(n_steps))

    # ---- pure-JAX references for verification (emulate the bf16 matmul inputs, f32 accum) ----
    def _mlp_ref(self, s):
        cdt = self.compute_dtype
        h = s.astype(jnp.float32)
        for i in range(self.n_layers):
            h = jnp.dot(h.astype(cdt), self.weights[i].astype(cdt),
                        preferred_element_type=jnp.float32) + self.biases[i]
            if i < self.n_layers - 1:
                h = _softplus(h)
        return h

    def forward_ref(self, t, state):
        state = jnp.asarray(state, jnp.float32).reshape(-1)
        t_vec = jnp.asarray(t, jnp.float32).reshape(-1)[:1]
        if self.include_cov:
            s = jnp.concatenate([state, t_vec, self.init_cond, self.admin, self.cov])
        else:
            s = jnp.concatenate([state, t_vec, self.init_cond, self.admin])
        return self._mlp_ref(s)

    def euler_ref(self, state0, t0, dt, n_steps):
        s = jnp.asarray(state0, jnp.float32).reshape(-1)
        t0 = jnp.float32(t0)
        dt = jnp.float32(dt)
        traj = []
        for i in range(n_steps):
            t = t0 + dt * jnp.float32(i)
            f = jax.vmap(lambda ss: self.forward_ref(t, jnp.reshape(ss, (1,)))[0])(s)
            s = s + dt * f
            traj.append(s)
        return jnp.stack(traj)


if __name__ == "__main__":
    key = jax.random.PRNGKey(0)

    # include_cov=True path: input features = 4 + n_cov
    n_cov = 4
    model = NodePallas(dim_c=(32, 32), dim_V=(16,), n_cov=n_cov, key=key)

    key, k_state, k_cov, k_b, k_t = jax.random.split(key, 5)
    state = jax.random.normal(k_state, (1,), jnp.float32)
    cov = jax.random.normal(k_cov, (n_cov,), jnp.float32)

    model.init_dose(5.0)
    model.get_admin(1.0)
    model.get_cov(cov)

    # 1) single RHS evaluation (original forward(t, state) semantics)
    t = 0.3
    out = jax.block_until_ready(model.forward(t, state))
    ref = model.forward_ref(t, state)
    assert out.shape == (1,)
    assert jnp.allclose(out, ref, atol=1e-4, rtol=1e-4), (out, ref)

    # 2) batched RHS evaluation: 300 (t, state) pairs in one pallas_call
    #    (pads to 512 lanes -> 2 "parallel" grid tiles of 256, weights resident in VMEM)
    Bn = 300
    states_b = jax.random.normal(k_b, (Bn,), jnp.float32)
    ts_b = jax.random.uniform(k_t, (Bn,), jnp.float32)
    out_b = jax.block_until_ready(model.forward_batch(ts_b, states_b))
    ref_b = jax.vmap(lambda tt, ss: model.forward_ref(tt, jnp.reshape(ss, (1,)))[0])(ts_b, states_b)
    assert out_b.shape == (Bn,)
    assert jnp.allclose(out_b, ref_b, atol=1e-3, rtol=1e-3), (out_b, ref_b)

    # 3) whole Euler integration (8 trajectories x 20 steps) inside ONE pallas_call
    n_steps = 20
    s0 = states_b[:8]
    traj = jax.block_until_ready(model.integrate_euler(s0, t0=0.0, dt=0.05, n_steps=n_steps))
    traj_ref = model.euler_ref(s0, 0.0, 0.05, n_steps)
    assert traj.shape == (n_steps, 8)
    assert jnp.allclose(traj, traj_ref, atol=2e-3, rtol=2e-3), (traj, traj_ref)

    # 4) include_cov=False path (input features = 4)
    model2 = NodePallas(dim_c=(16,), dim_V=None, n_cov=0, key=jax.random.PRNGKey(1))
    model2.init_dose(2.0)
    model2.get_admin(3.0)
    s2 = jnp.array([0.5], jnp.float32)
    out2 = jax.block_until_ready(model2.forward(0.7, s2))
    ref2 = model2.forward_ref(0.7, s2)
    assert jnp.allclose(out2, ref2, atol=1e-4, rtol=1e-4), (out2, ref2)

    print("KERNEL_OK")
</pallas_src>

<mosaic_0001>
module attributes {stable_mosaic.version = 11 : i64} {
  func.func @kernel(%arg0: i32, %arg1: memref<3x128x128xbf16, #tpu.memory_space<vmem>>, %arg2: memref<3x128x1xf32, #tpu.memory_space<vmem>>, %arg3: memref<128x1xf32, #tpu.memory_space<vmem>>, %arg4: memref<1x128xf32, #tpu.memory_space<vmem>>, %arg5: memref<1x128xf32, #tpu.memory_space<vmem>>, %arg6: memref<1x128xf32, #tpu.memory_space<vmem>>) attributes {dimension_semantics = [#tpu.dimension_semantics<parallel>], iteration_bounds = array<i64: 1>, scalar_prefetch = 0 : i64, scratch_operands = 0 : i64, tpu.core_type = #tpu.core_type<tc>, window_params = [{pipeline_mode = #tpu.pipeline_mode<synchronous>, transform_indices = @transform_0, window_bounds = array<i64: 3, 128, 128>}, {pipeline_mode = #tpu.pipeline_mode<synchronous>, transform_indices = @transform_1, window_bounds = array<i64: 3, 128, 1>}, {pipeline_mode = #tpu.pipeline_mode<synchronous>, transform_indices = @transform_2, window_bounds = array<i64: 128, 1>}, {transform_indices = @transform_3, window_bounds = array<i64: 1, 128>}, {transform_indices = @transform_4, window_bounds = array<i64: 1, 128>}, {transform_indices = @transform_5, window_bounds = array<i64: 1, 128>}]} {
    %0 = tpu.iota {dimensions = array<i32: 0>} : vector<128x128xi32>
    %c0_i32 = arith.constant 0 : i32
    %1 = vector.broadcast %c0_i32 : i32 to vector<128x128xi32>
    %2 = arith.cmpi eq, %0, %1 : vector<128x128xi32>
    %c0 = arith.constant 0 : index
    %c0_0 = arith.constant 0 : index
    %3 = vector.load %arg5[%c0, %c0_0] : memref<1x128xf32, #tpu.memory_space<vmem>>, vector<1x128xf32>
    %cst = arith.constant 0.000000e+00 : f32
    %4 = vector.shape_cast %3 : vector<1x128xf32> to vector<1x128xf32>
    %5 = vector.broadcast %4 : vector<1x128xf32> to vector<128x128xf32>
    %6 = vector.broadcast %cst : f32 to vector<128x128xf32>
    %7 = arith.select %2, %5, %6 : vector<128x128xi1>, vector<128x128xf32>
    %c1_i32 = arith.constant 1 : i32
    %8 = vector.broadcast %c1_i32 : i32 to vector<128x128xi32>
    %9 = arith.cmpi eq, %0, %8 : vector<128x128xi32>
    %c0_1 = arith.constant 0 : index
    %c0_2 = arith.constant 0 : index
    %10 = vector.load %arg4[%c0_1, %c0_2] : memref<1x128xf32, #tpu.memory_space<vmem>>, vector<1x128xf32>
    %cst_3 = arith.constant 0.000000e+00 : f32
    %11 = vector.shape_cast %10 : vector<1x128xf32> to vector<1x128xf32>
    %12 = vector.broadcast %11 : vector<1x128xf32> to vector<128x128xf32>
    %13 = vector.broadcast %cst_3 : f32 to vector<128x128xf32>
    %14 = arith.select %9, %12, %13 : vector<128x128xi1>, vector<128x128xf32>
    %15 = arith.addf %7, %14 : vector<128x128xf32>
    %c0_4 = arith.constant 0 : index
    %c0_5 = arith.constant 0 : index
    %16 = vector.load %arg3[%c0_4, %c0_5] : memref<128x1xf32, #tpu.memory_space<vmem>>, vector<128x1xf32>
    %17 = vector.broadcast %16 : vector<128x1xf32> to vector<128x128xf32>
    %18 = arith.addf %15, %17 : vector<128x128xf32>
    %c0_6 = arith.constant 0 : index
    %c0_7 = arith.constant 0 : index
    %c0_8 = arith.constant 0 : index
    %19 = vector.load %arg1[%c0_6, %c0_7, %c0_8] : memref<3x128x128xbf16, #tpu.memory_space<vmem>>, vector<1x128x128xbf16>
    %20 = vector.shape_cast %19 : vector<1x128x128xbf16> to vector<128x128xbf16>
    %21 = arith.truncf %18 : vector<128x128xf32> to vector<128x128xbf16>
    %cst_9 = arith.constant dense<0.000000e+00> : vector<128x128xf32>
    %22 = tpu.matmul %20, %21, %cst_9 {dimension_numbers = #tpu.dot_dimension_numbers<[1], [0], [0], [1], [0, 0, 1, 1], [], []>} : vector<128x128xbf16>, vector<128x128xbf16>, vector<128x128xf32> -> vector<128x128xf32>
    %c0_10 = arith.constant 0 : index
    %c0_11 = arith.constant 0 : index
    %c0_12 = arith.constant 0 : index
    %23 = vector.load %arg2[%c0_10, %c0_11, %c0_12] : memref<3x128x1xf32, #tpu.memory_space<vmem>>, vector<1x128x1xf32>
    %24 = vector.shape_cast %23 : vector<1x128x1xf32> to vector<128x1xf32>
    %25 = vector.broadcast %24 : vector<128x1xf32> to vector<128x128xf32>
    %26 = arith.addf %22, %25 : vector<128x128xf32>
    %cst_13 = arith.constant 0.000000e+00 : f32
    %27 = vector.broadcast %cst_13 : f32 to vector<128x128xf32>
    %28 = arith.maximumf %26, %27 : vector<128x128xf32>
    %29 = vector.broadcast %cst_13 : f32 to vector<128x128xf32>
    %30 = arith.subf %26, %29 : vector<128x128xf32>
    %31 = arith.cmpf one, %30, %30 : vector<128x128xf32>
    %32 = vector.broadcast %cst_13 : f32 to vector<128x128xf32>
    %33 = arith.addf %26, %32 : vector<128x128xf32>
    %34 = math.absf %30 : vector<128x128xf32>
    %cst_14 = arith.constant 0.000000e+00 : f32
    %35 = vector.broadcast %cst_14 : f32 to vector<128x128xf32>
    %36 = arith.subf %35, %34 : vector<128x128xf32>
    %37 = math.exp %36 : vector<128x128xf32>
    %38 = math.log1p %37 : vector<128x128xf32>
    %39 = arith.addf %28, %38 : vector<128x128xf32>
    %40 = arith.select %31, %33, %39 : vector<128x128xi1>, vector<128x128xf32>
    %c1 = arith.constant 1 : index
    %c0_15 = arith.constant 0 : index
    %c0_16 = arith.constant 0 : index
    %41 = vector.load %arg1[%c1, %c0_15, %c0_16] : memref<3x128x128xbf16, #tpu.memory_space<vmem>>, vector<1x128x128xbf16>
    %42 = vector.shape_cast %41 : vector<1x128x128xbf16> to vector<128x128xbf16>
    %43 = arith.truncf %40 : vector<128x128xf32> to vector<128x128xbf16>
    %cst_17 = arith.constant dense<0.000000e+00> : vector<128x128xf32>
    %44 = tpu.matmul %42, %43, %cst_17 {dimension_numbers = #tpu.dot_dimension_numbers<[1], [0], [0], [1], [0, 0, 1, 1], [], []>} : vector<128x128xbf16>, vector<128x128xbf16>, vector<128x128xf32> -> vector<128x128xf32>
    %c1_18 = arith.constant 1 : index
    %c0_19 = arith.constant 0 : index
    %c0_20 = arith.constant 0 : index
    %45 = vector.load %arg2[%c1_18, %c0_19, %c0_20] : memref<3x128x1xf32, #tpu.memory_space<vmem>>, vector<1x128x1xf32>
    %46 = vector.shape_cast %45 : vector<1x128x1xf32> to vector<128x1xf32>
    %47 = vector.broadcast %46 : vector<128x1xf32> to vector<128x128xf32>
    %48 = arith.addf %44, %47 : vector<128x128xf32>
    %cst_21 = arith.constant 0.000000e+00 : f32
    %49 = vector.broadcast %cst_21 : f32 to vector<128x128xf32>
    %50 = arith.maximumf %48, %49 : vector<128x128xf32>
    %51 = vector.broadcast %cst_21 : f32 to vector<128x128xf32>
    %52 = arith.subf %48, %51 : vector<128x128xf32>
    %53 = arith.cmpf one, %52, %52 : vector<128x128xf32>
    %54 = vector.broadcast %cst_21 : f32 to vector<128x128xf32>
    %55 = arith.addf %48, %54 : vector<128x128xf32>
    %56 = math.absf %52 : vector<128x128xf32>
    %cst_22 = arith.constant 0.000000e+00 : f32
    %57 = vector.broadcast %cst_22 : f32 to vector<128x128xf32>
    %58 = arith.subf %57, %56 : vector<128x128xf32>
    %59 = math.exp %58 : vector<128x128xf32>
    %60 = math.log1p %59 : vector<128x128xf32>
    %61 = arith.addf %50, %60 : vector<128x128xf32>
    %62 = arith.select %53, %55, %61 : vector<128x128xi1>, vector<128x128xf32>
    %c2 = arith.constant 2 : index
    %c0_23 = arith.constant 0 : index
    %c0_24 = arith.constant 0 : index
    %63 = vector.load %arg1[%c2, %c0_23, %c0_24] : memref<3x128x128xbf16, #tpu.memory_space<vmem>>, vector<1x128x128xbf16>
    %64 = vector.shape_cast %63 : vector<1x128x128xbf16> to vector<128x128xbf16>
    %65 = arith.truncf %62 : vector<128x128xf32> to vector<128x128xbf16>
    %cst_25 = arith.constant dense<0.000000e+00> : vector<128x128xf32>
    %66 = tpu.matmul %64, %65, %cst_25 {dimension_numbers = #tpu.dot_dimension_numbers<[1], [0], [0], [1], [0, 0, 1, 1], [], []>} : vector<128x128xbf16>, vector<128x128xbf16>, vector<128x128xf32> -> vector<128x128xf32>
    %c2_26 = arith.constant 2 : index
    %c0_27 = arith.constant 0 : index
    %c0_28 = arith.constant 0 : index
    %67 = vector.load %arg2[%c2_26, %c0_27, %c0_28] : memref<3x128x1xf32, #tpu.memory_space<vmem>>, vector<1x128x1xf32>
    %68 = vector.shape_cast %67 : vector<1x128x1xf32> to vector<128x1xf32>
    %69 = vector.broadcast %68 : vector<128x1xf32> to vector<128x128xf32>
    %70 = arith.addf %66, %69 : vector<128x128xf32>
    %71 = vector.extract_strided_slice %70 {offsets = [0, 0], sizes = [1, 128], strides = [1, 1]} : vector<128x128xf32> to vector<1x128xf32>
    %c0_29 = arith.constant 0 : index
    %c0_30 = arith.constant 0 : index
    %72 = vector.load %arg6[%c0_29, %c0_30] : memref<1x128xf32, #tpu.memory_space<vmem>>, vector<1x128xf32>
    tpu.vector_store %arg6[%c0_29, %c0_30], %71 {strides = array<i32>} : memref<1x128xf32, #tpu.memory_space<vmem>>, vector<1x128xf32>,
    return
  }
  func.func @transform_0(%arg0: i32) -> (i32, i32, i32) {
    %c0_i32 = arith.constant 0 : i32
    %c0_i32_0 = arith.constant 0 : i32
    %c0_i32_1 = arith.constant 0 : i32
    %c0_i32_2 = arith.constant 0 : i32
    return %c0_i32, %c0_i32_0, %c0_i32_1 : i32, i32, i32
  }
  func.func @transform_1(%arg0: i32) -> (i32, i32, i32) {
    %c0_i32 = arith.constant 0 : i32
    %c0_i32_0 = arith.constant 0 : i32
    %c0_i32_1 = arith.constant 0 : i32
    %c0_i32_2 = arith.constant 0 : i32
    return %c0_i32, %c0_i32_0, %c0_i32_1 : i32, i32, i32
  }
  func.func @transform_2(%arg0: i32) -> (i32, i32) {
    %c0_i32 = arith.constant 0 : i32
    %c0_i32_0 = arith.constant 0 : i32
    %c0_i32_1 = arith.constant 0 : i32
    return %c0_i32, %c0_i32_0 : i32, i32
  }
  func.func @transform_3(%arg0: i32) -> (i32, i32) {
    %c0_i32 = arith.constant 0 : i32
    %c0_i32_0 = arith.constant 0 : i32
    return %c0_i32, %arg0 : i32, i32
  }
  func.func @transform_4(%arg0: i32) -> (i32, i32) {
    %c0_i32 = arith.constant 0 : i32
    %c0_i32_0 = arith.constant 0 : i32
    return %c0_i32, %arg0 : i32, i32
  }
  func.func @transform_5(%arg0: i32) -> (i32, i32) {
    %c0_i32 = arith.constant 0 : i32
    %c0_i32_0 = arith.constant 0 : i32
    return %c0_i32, %arg0 : i32, i32
  }
}

</mosaic_0001>

<llo_original>
// kernel: _node_rhs_batch.1
$region0: #{_node_rhs_batch.1}
  #allocation0 [shape = 'u32[]', space=smem, size = 0x4, offset = 0x4, fixed_abs, tag = 'smem constant byte address 0x4 - core index']
  #allocation1 [shape = 'u32[144,128]{1,0:T(1,128)}', space=vmem, size = 0x12000, scoped, tag = 'internal scratch']
  %s0 = inlined_call_operand.vmem [shape: bf16[3,128,128], index: 0, kind: input, shape index: {}]
  %s1 = inlined_call_operand.vmem [shape: f32[3,128,1], index: 1, kind: input, shape index: {}]
  %s2 = inlined_call_operand.vmem [shape: f32[128,1], index: 2, kind: input, shape index: {}]
  %s3 = inlined_call_operand.vmem [shape: f32[1,128], index: 3, kind: input, shape index: {}]
  %s4 = inlined_call_operand.vmem [shape: f32[1,128], index: 4, kind: input, shape index: {}]
  %s5 = inlined_call_operand.hbm [shape: f32[1,128], index: 5, kind: output, shape index: {}]
  %s6 = sld [smem:[#allocation0]]
  $region30: #{_node_rhs_batch.1} parent=0
    _
  %s8 = ssub.s32 1, %s6
  %s9 = scalar_select 0, %s8, %s6
  $region1: #{_node_rhs_batch.1} parent=0
    #allocation2 [shape = 'u8[512]{0}', space=vmem, size = 0x400, scoped, tag = 'output window, operand 0, single buffered']
    #allocation3 [shape = 's32[1]{0}', space=sflag, size = 0x4, scoped, tag = 'scoped memory for _node_rhs_batch.1']
    %10 = vsyncpa [#allocation3], 0
    // Predicated region
    $region2: #{_node_rhs_batch.1} parent=1 // pred_check
      _
    $region3: #{_node_rhs_batch.1} parent=1 // pred_check_branch
      %12 = sbr.rel (0) target = $region5
    $region4: #{_node_rhs_batch.1} parent=1 // pred_region
      _
    $region5: #{_node_rhs_batch.1} parent=1 // pred_fallthru
      _
    // Predicated region
    $region6: #{_node_rhs_batch.1} parent=1 // pred_check
      _
    $region7: #{_node_rhs_batch.1} parent=1 // pred_check_branch
      %14 = sbr.rel (0) target = $region9
    $region8: #{_node_rhs_batch.1} parent=1 // pred_region
      _
    $region9: #{_node_rhs_batch.1} parent=1 // pred_fallthru
      _
    // Predicated region
    $region10: #{_node_rhs_batch.1} parent=1 // pred_check
      _
    $region11: #{_node_rhs_batch.1} parent=1 // pred_check_branch
      %16 = sbr.rel (0) target = $region13
    $region12: #{_node_rhs_batch.1} parent=1 // pred_region
      _
    $region13: #{_node_rhs_batch.1} parent=1 // pred_fallthru
      _
    // Predicated region
    $region14: #{_node_rhs_batch.1} parent=1 // pred_check
      _
    $region15: #{_node_rhs_batch.1} parent=1 // pred_check_branch
      %18 = sbr.rel (0) target = $region17
    $region16: #{_node_rhs_batch.1} parent=1 // pred_region
      _
    $region17: #{_node_rhs_batch.1} parent=1 // pred_fallthru
      _
    // Predicated region
    $region18: #{_node_rhs_batch.1} parent=1 // pred_check
      _
    $region19: #{_node_rhs_batch.1} parent=1 // pred_check_branch
      %20 = sbr.rel (0) target = $region21
    $region20: #{_node_rhs_batch.1} parent=1 // pred_region
      _
    $region21: #{_node_rhs_batch.1} parent=1 // pred_fallthru
      _
    %v22 = vlaneseq
    %v23 = vshrl.u32 %v22, 7
    %v24 = vadd.s32 %v23, 8
    %v25 = vadd.s32 %v23, 16
    %v26 = vadd.s32 %v23, 24
    %v27 = vadd.s32 %v23, 32
    %v28 = vadd.s32 %v23, 40
    %v29 = vadd.s32 %v23, 48
    %v30 = vadd.s32 %v23, 56
    %v31 = vadd.s32 %v23, 64
    %v32 = vadd.s32 %v23, 72
    %v33 = vadd.s32 %v23, 80
    %v34 = vadd.s32 %v23, 88
    %v35 = vadd.s32 %v23, 96
    %v36 = vadd.s32 %v23, 104
    %v37 = vadd.s32 %v23, 112
    %v38 = vadd.s32 %v23, 120
    %vm39 = vcmp.eq.s32.totalorder %v23, 0
    %vm40 = vcmp.eq.s32.totalorder %v24, 0
    %vm41 = vcmp.eq.s32.totalorder %v25, 0
    %vm42 = vcmp.eq.s32.totalorder %v26, 0
    %vm43 = vcmp.eq.s32.totalorder %v27, 0
    %vm44 = vcmp.eq.s32.totalorder %v28, 0
    %vm45 = vcmp.eq.s32.totalorder %v29, 0
    %vm46 = vcmp.eq.s32.totalorder %v30, 0
    %vm47 = vcmp.eq.s32.totalorder %v31, 0
    %vm48 = vcmp.eq.s32.totalorder %v32, 0
    %vm49 = vcmp.eq.s32.totalorder %v33, 0
    %vm50 = vcmp.eq.s32.totalorder %v34, 0
    %vm51 = vcmp.eq.s32.totalorder %v35, 0
    %vm52 = vcmp.eq.s32.totalorder %v36, 0
    %vm53 = vcmp.eq.s32.totalorder %v37, 0
    %vm54 = vcmp.eq.s32.totalorder %v38, 0
    %v55 = vld [vmem:[%s4] sm:$0x1]
    %v57 = vlaneseq
    %v58 = vshrl.u32 %v57, 7
    %v59 = vsub.s32 0, %v58
    %v60 = vrot.slane %v55, %v59
    %v62 = vsel %vm39, %v60, 0.0
    %v63 = vsel %vm40, %v60, 0.0
    %v64 = vsel %vm41, %v60, 0.0
    %v65 = vsel %vm42, %v60, 0.0
    %v66 = vsel %vm43, %v60, 0.0
    %v67 = vsel %vm44, %v60, 0.0
    %v68 = vsel %vm45, %v60, 0.0
    %v69 = vsel %vm46, %v60, 0.0
    %v70 = vsel %vm47, %v60, 0.0
    %v71 = vsel %vm48, %v60, 0.0
    %v72 = vsel %vm49, %v60, 0.0
    %v73 = vsel %vm50, %v60, 0.0
    %v74 = vsel %vm51, %v60, 0.0
    %v75 = vsel %vm52, %v60, 0.0
    %v76 = vsel %vm53, %v60, 0.0
    %v77 = vsel %vm54, %v60, 0.0
    %vm78 = vcmp.eq.s32.totalorder %v23, 1
    %vm79 = vcmp.eq.s32.totalorder %v24, 1
    %vm80 = vcmp.eq.s32.totalorder %v25, 1
    %vm81 = vcmp.eq.s32.totalorder %v26, 1
    %vm82 = vcmp.eq.s32.totalorder %v27, 1
    %vm83 = vcmp.eq.s32.totalorder %v28, 1
    %vm84 = vcmp.eq.s32.totalorder %v29, 1
    %vm85 = vcmp.eq.s32.totalorder %v30, 1
    %vm86 = vcmp.eq.s32.totalorder %v31, 1
    %vm87 = vcmp.eq.s32.totalorder %v32, 1
    %vm88 = vcmp.eq.s32.totalorder %v33, 1
    %vm89 = vcmp.eq.s32.totalorder %v34, 1
    %vm90 = vcmp.eq.s32.totalorder %v35, 1
    %vm91 = vcmp.eq.s32.totalorder %v36, 1
    %vm92 = vcmp.eq.s32.totalorder %v37, 1
    %vm93 = vcmp.eq.s32.totalorder %v38, 1
    %v94 = vld [vmem:[%s3] sm:$0x1]
    %v96 = vlaneseq
    %v97 = vshrl.u32 %v96, 7
    %v98 = vsub.s32 0, %v97
    %v99 = vrot.slane %v94, %v98
    %v101 = vsel %vm78, %v99, 0.0
    %v102 = vsel %vm79, %v99, 0.0
    %v103 = vsel %vm80, %v99, 0.0
    %v104 = vsel %vm81, %v99, 0.0
    %v105 = vsel %vm82, %v99, 0.0
    %v106 = vsel %vm83, %v99, 0.0
    %v107 = vsel %vm84, %v99, 0.0
    %v108 = vsel %vm85, %v99, 0.0
    %v109 = vsel %vm86, %v99, 0.0
    %v110 = vsel %vm87, %v99, 0.0
    %v111 = vsel %vm88, %v99, 0.0
    %v112 = vsel %vm89, %v99, 0.0
    %v113 = vsel %vm90, %v99, 0.0
    %v114 = vsel %vm91, %v99, 0.0
    %v115 = vsel %vm92, %v99, 0.0
    %v116 = vsel %vm93, %v99, 0.0
    %v117 = vadd.f32 %v62, %v101
    %v118 = vadd.f32 %v63, %v102
    %v119 = vadd.f32 %v64, %v103
    %v120 = vadd.f32 %v65, %v104
    %v121 = vadd.f32 %v66, %v105
    %v122 = vadd.f32 %v67, %v106
    %v123 = vadd.f32 %v68, %v107
    %v124 = vadd.f32 %v69, %v108
    %v125 = vadd.f32 %v70, %v109
    %v126 = vadd.f32 %v71, %v110
    %v127 = vadd.f32 %v72, %v111
    %v128 = vadd.f32 %v73, %v112
    %v129 = vadd.f32 %v74, %v113
    %v130 = vadd.f32 %v75, %v114
    %v131 = vadd.f32 %v76, %v115
    %v132 = vadd.f32 %v77, %v116
    %v133 = vld [vmem:[%s2] sm:$0xff]
    %v134 = vld [vmem:[%s2 + $0x8] sm:$0xff]
    %v135 = vld [vmem:[%s2 + $0x10] sm:$0xff]
    %v136 = vld [vmem:[%s2 + $0x18] sm:$0xff]
    %v137 = vld [vmem:[%s2 + $0x20] sm:$0xff]
    %v138 = vld [vmem:[%s2 + $0x28] sm:$0xff]
    %v139 = vld [vmem:[%s2 + $0x30] sm:$0xff]
    %v140 = vld [vmem:[%s2 + $0x38] sm:$0xff]
    %v141 = vld [vmem:[%s2 + $0x40] sm:$0xff]
    %v142 = vld [vmem:[%s2 + $0x48] sm:$0xff]
    %v143 = vld [vmem:[%s2 + $0x50] sm:$0xff]
    %v144 = vld [vmem:[%s2 + $0x58] sm:$0xff]
    %v145 = vld [vmem:[%s2 + $0x60] sm:$0xff]
    %v146 = vld [vmem:[%s2 + $0x68] sm:$0xff]
    %v147 = vld [vmem:[%s2 + $0x70] sm:$0xff]
    %v148 = vld [vmem:[%s2 + $0x78] sm:$0xff]
    %150 = vset.pattern.permute.xlu0 0
    %151 = vperm.xlu0 %150, %v133
    %v152 = vpop.permute.xlu0 %151
    %155 = vset.pattern.permute.xlu0 0
    %156 = vperm.xlu0 %155, %v134
    %v157 = vpop.permute.xlu0 %156
    %160 = vset.pattern.permute.xlu0 0
    %161 = vperm.xlu0 %160, %v135
    %v162 = vpop.permute.xlu0 %161
    %165 = vset.pattern.permute.xlu0 0
    %166 = vperm.xlu0 %165, %v136
    %v167 = vpop.permute.xlu0 %166
    %170 = vset.pattern.permute.xlu0 0
    %171 = vperm.xlu0 %170, %v137
    %v172 = vpop.permute.xlu0 %171
    %175 = vset.pattern.permute.xlu0 0
    %176 = vperm.xlu0 %175, %v138
    %v177 = vpop.permute.xlu0 %176
    %180 = vset.pattern.permute.xlu0 0
    %181 = vperm.xlu0 %180, %v139
    %v182 = vpop.permute.xlu0 %181
    %185 = vset.pattern.permute.xlu0 0
    %186 = vperm.xlu0 %185, %v140
    %v187 = vpop.permute.xlu0 %186
    %190 = vset.pattern.permute.xlu0 0
    %191 = vperm.xlu0 %190, %v141
    %v192 = vpop.permute.xlu0 %191
    %195 = vset.pattern.permute.xlu0 0
    %196 = vperm.xlu0 %195, %v142
    %v197 = vpop.permute.xlu0 %196
    %200 = vset.pattern.permute.xlu0 0
    %201 = vperm.xlu0 %200, %v143
    %v202 = vpop.permute.xlu0 %201
    %205 = vset.pattern.permute.xlu0 0
    %206 = vperm.xlu0 %205, %v144
    %v207 = vpop.permute.xlu0 %206
    %210 = vset.pattern.permute.xlu0 0
    %211 = vperm.xlu0 %210, %v145
    %v212 = vpop.permute.xlu0 %211
    %215 = vset.pattern.permute.xlu0 0
    %216 = vperm.xlu0 %215, %v146
    %v217 = vpop.permute.xlu0 %216
    %220 = vset.pattern.permute.xlu0 0
    %221 = vperm.xlu0 %220, %v147
    %v222 = vpop.permute.xlu0 %221
    %225 = vset.pattern.permute.xlu0 0
    %226 = vperm.xlu0 %225, %v148
    %v227 = vpop.permute.xlu0 %226
    %v229 = vadd.f32 %v117, %v152
    %v230 = vadd.f32 %v118, %v157
    %v231 = vadd.f32 %v119, %v162
    %v232 = vadd.f32 %v120, %v167
    %v233 = vadd.f32 %v121, %v172
    %v234 = vadd.f32 %v122, %v177
    %v235 = vadd.f32 %v123, %v182
    %v236 = vadd.f32 %v124, %v187
    %v237 = vadd.f32 %v125, %v192
    %v238 = vadd.f32 %v126, %v197
    %v239 = vadd.f32 %v127, %v202
    %v240 = vadd.f32 %v128, %v207
    %v241 = vadd.f32 %v129, %v212
    %v242 = vadd.f32 %v130, %v217
    %v243 = vadd.f32 %v131, %v222
    %v244 = vadd.f32 %v132, %v227
    %v245 = vld [vmem:[%s0] sm:$0xf]
    %v246 = vld [vmem:[%s0 + $0x4] sm:$0xf]
    %v247 = vld [vmem:[%s0 + $0x8] sm:$0xf]
    %v248 = vld [vmem:[%s0 + $0xc] sm:$0xf]
    %v249 = vld [vmem:[%s0 + $0x10] sm:$0xf]
    %v250 = vld [vmem:[%s0 + $0x14] sm:$0xf]
    %v251 = vld [vmem:[%s0 + $0x18] sm:$0xf]
    %v252 = vld [vmem:[%s0 + $0x1c] sm:$0xf]
    %v253 = vld [vmem:[%s0 + $0x20] sm:$0xf]
    %v254 = vld [vmem:[%s0 + $0x24] sm:$0xf]
    %v255 = vld [vmem:[%s0 + $0x28] sm:$0xf]
    %v256 = vld [vmem:[%s0 + $0x2c] sm:$0xf]
    %v257 = vld [vmem:[%s0 + $0x30] sm:$0xf]
    %v258 = vld [vmem:[%s0 + $0x34] sm:$0xf]
    %v259 = vld [vmem:[%s0 + $0x38] sm:$0xf]
    %v260 = vld [vmem:[%s0 + $0x3c] sm:$0xf]
    %v261 = vpack.c.bf16 %v230, %v229
    %v262 = vpack.c.bf16 %v232, %v231
    %v263 = vpack.c.bf16 %v234, %v233
    %v264 = vpack.c.bf16 %v236, %v235
    %v265 = vpack.c.bf16 %v238, %v237
    %v266 = vpack.c.bf16 %v240, %v239
    %v267 = vpack.c.bf16 %v242, %v241
    %v268 = vpack.c.bf16 %v244, %v243
    %v269 = vld [vmem:[%s1] sm:$0xff]
    %v270 = vld [vmem:[%s1 + $0x8] sm:$0xff]
    %v271 = vld [vmem:[%s1 + $0x10] sm:$0xff]
    %v272 = vld [vmem:[%s1 + $0x18] sm:$0xff]
    %v273 = vld [vmem:[%s1 + $0x20] sm:$0xff]
    %v274 = vld [vmem:[%s1 + $0x28] sm:$0xff]
    %v275 = vld [vmem:[%s1 + $0x30] sm:$0xff]
    %v276 = vld [vmem:[%s1 + $0x38] sm:$0xff]
    %v277 = vld [vmem:[%s1 + $0x40] sm:$0xff]
    %v278 = vld [vmem:[%s1 + $0x48] sm:$0xff]
    %v279 = vld [vmem:[%s1 + $0x50] sm:$0xff]
    %v280 = vld [vmem:[%s1 + $0x58] sm:$0xff]
    %v281 = vld [vmem:[%s1 + $0x60] sm:$0xff]
    %v282 = vld [vmem:[%s1 + $0x68] sm:$0xff]
    %v283 = vld [vmem:[%s1 + $0x70] sm:$0xff]
    %v284 = vld [vmem:[%s1 + $0x78] sm:$0xff]
    %286 = vset.pattern.permute.xlu0 0
    %287 = vperm.xlu0 %286, %v269
    %v288 = vpop.permute.xlu0 %287
    %291 = vset.pattern.permute.xlu0 0
    %292 = vperm.xlu0 %291, %v270
    %v293 = vpop.permute.xlu0 %292
    %296 = vset.pattern.permute.xlu0 0
    %297 = vperm.xlu0 %296, %v271
    %v298 = vpop.permute.xlu0 %297
    %301 = vset.pattern.permute.xlu0 0
    %302 = vperm.xlu0 %301, %v272
    %v303 = vpop.permute.xlu0 %302
    %306 = vset.pattern.permute.xlu0 0
    %307 = vperm.xlu0 %306, %v273
    %v308 = vpop.permute.xlu0 %307
    %311 = vset.pattern.permute.xlu0 0
    %312 = vperm.xlu0 %311, %v274
    %v313 = vpop.permute.xlu0 %312
    %316 = vset.pattern.permute.xlu0 0
    %317 = vperm.xlu0 %316, %v275
    %v318 = vpop.permute.xlu0 %317
    %321 = vset.pattern.permute.xlu0 0
    %322 = vperm.xlu0 %321, %v276
    %v323 = vpop.permute.xlu0 %322
    %326 = vset.pattern.permute.xlu0 0
    %327 = vperm.xlu0 %326, %v277
    %v328 = vpop.permute.xlu0 %327
    %331 = vset.pattern.permute.xlu0 0
    %332 = vperm.xlu0 %331, %v278
    %v333 = vpop.permute.xlu0 %332
    %336 = vset.pattern.permute.xlu0 0
    %337 = vperm.xlu0 %336, %v279
    %v338 = vpop.permute.xlu0 %337
    %341 = vset.pattern.permute.xlu0 0
    %342 = vperm.xlu0 %341, %v280
    %v343 = vpop.permute.xlu0 %342
    %346 = vset.pattern.permute.xlu0 0
    %347 = vperm.xlu0 %346, %v281
    %v348 = vpop.permute.xlu0 %347
    %351 = vset.pattern.permute.xlu0 0
    %352 = vperm.xlu0 %351, %v282
    %v353 = vpop.permute.xlu0 %352
    %356 = vset.pattern.permute.xlu0 0
    %357 = vperm.xlu0 %356, %v283
    %v358 = vpop.permute.xlu0 %357
    %361 = vset.pattern.permute.xlu0 0
    %362 = vperm.xlu0 %361, %v284
    %v363 = vpop.permute.xlu0 %362
    %v381 = vunpack.c.l.b16 %v245
    %v382 = vunpack.c.l.b16 %v246
    %v383 = vunpack.c.l.b16 %v247
    %v384 = vunpack.c.l.b16 %v248
    %v385 = vunpack.c.l.b16 %v249
    %v386 = vunpack.c.l.b16 %v250
    %v387 = vunpack.c.l.b16 %v251
    %v388 = vunpack.c.l.b16 %v252
    %v389 = vunpack.c.l.b16 %v253
    %v390 = vunpack.c.l.b16 %v254
    %v391 = vunpack.c.l.b16 %v255
    %v392 = vunpack.c.l.b16 %v256
    %v393 = vunpack.c.l.b16 %v257
    %v394 = vunpack.c.l.b16 %v258
    %v395 = vunpack.c.l.b16 %v259
    %v396 = vunpack.c.l.b16 %v260
    %v397 = vpack.c.b16 %v382, %v381
    %v398 = vpack.c.b16 %v384, %v383
    %v399 = vpack.c.b16 %v386, %v385
    %v400 = vpack.c.b16 %v388, %v387
    %v401 = vpack.c.b16 %v390, %v389
    %v402 = vpack.c.b16 %v392, %v391
    %v403 = vpack.c.b16 %v394, %v393
    %v404 = vpack.c.b16 %v396, %v395
    %413 = vmatprep.subr.bf16.mxu0 0
    %414 = vmatpush1.bf16.msra.mxu0 %v268
    %415 = vmatprep.subr.bf16.mxu0 0
    %416 = vmatpush1.bf16.msra.mxu0 %v267
    %417 = vmatprep.subr.bf16.mxu0 0
    %418 = vmatpush1.bf16.msra.mxu0 %v266
    %419 = vmatprep.subr.bf16.mxu0 0
    %420 = vmatpush1.bf16.msra.mxu0 %v265
    %421 = vmatprep.subr.bf16.mxu0 0
    %422 = vmatpush1.bf16.msra.mxu0 %v264
    %423 = vmatprep.subr.bf16.mxu0 0
    %424 = vmatpush1.bf16.msra.mxu0 %v263
    %425 = vmatprep.subr.bf16.mxu0 0
    %426 = vmatpush1.bf16.msra.mxu0 %v262
    %427 = vmatprep.subr.bf16.mxu0 0
    %428 = vmatpush1.bf16.msra.mxu0 %v261
    %429 = vmatprep.subr.bf16.mxu0 0
    %430 = vmatpush2.bf16.msra.mxu0 0
    %431 = vmatprep.subr.bf16.mxu0 0
    %432 = vmatpush2.bf16.msra.mxu0 0
    %433 = vmatprep.subr.bf16.mxu0 0
    %434 = vmatpush2.bf16.msra.mxu0 0
    %435 = vmatprep.subr.bf16.mxu0 0
    %436 = vmatpush2.bf16.msra.mxu0 0
    %437 = vmatprep.subr.bf16.mxu0 0
    %438 = vmatpush2.bf16.msra.mxu0 0
    %439 = vmatprep.subr.bf16.mxu0 0
    %440 = vmatpush2.bf16.msra.mxu0 0
    %441 = vmatprep.subr.bf16.mxu0 0
    %442 = vmatpush2.bf16.msra.mxu0 0
    %443 = vmatprep.subr.bf16.mxu0 0
    %444 = vmatpush2.bf16.msra.mxu0 0
    %445 = vmatprep.mubr.bf16.mxu0 0
    %446 = vmatmul.mubr.bf16.gmra.mxu0 %v397
    %v447 = vpop.f32.mrf.mxu0
    %v448 = vadd.f32 %v288, %v447
    %v449 = vpop.f32.mrf.mxu0
    %v450 = vpop.f32.mrf.mxu0
    %v451 = vadd.f32 %v293, %v450
    %v452 = vpop.f32.mrf.mxu0
    %453 = vmatprep.mubr.bf16.mxu0 0
    %454 = vmatmul.mubr.bf16.gmra.mxu0 %v398
    %v455 = vpop.f32.mrf.mxu0
    %v456 = vadd.f32 %v298, %v455
    %v457 = vpop.f32.mrf.mxu0
    %v458 = vpop.f32.mrf.mxu0
    %v459 = vadd.f32 %v303, %v458
    %v460 = vpop.f32.mrf.mxu0
    %461 = vmatprep.mubr.bf16.mxu0 0
    %462 = vmatmul.mubr.bf16.gmra.mxu0 %v399
    %v463 = vpop.f32.mrf.mxu0
    %v464 = vadd.f32 %v308, %v463
    %v465 = vpop.f32.mrf.mxu0
    %v466 = vpop.f32.mrf.mxu0
    %v467 = vadd.f32 %v313, %v466
    %v468 = vpop.f32.mrf.mxu0
    %469 = vmatprep.mubr.bf16.mxu0 0
    %470 = vmatmul.mubr.bf16.gmra.mxu0 %v400
    %v471 = vpop.f32.mrf.mxu0
    %v472 = vadd.f32 %v318, %v471
    %v473 = vpop.f32.mrf.mxu0
    %v474 = vpop.f32.mrf.mxu0
    %v475 = vadd.f32 %v323, %v474
    %v476 = vpop.f32.mrf.mxu0
    %477 = vmatprep.mubr.bf16.mxu0 0
    %478 = vmatmul.mubr.bf16.gmra.mxu0 %v401
    %v479 = vpop.f32.mrf.mxu0
    %v480 = vadd.f32 %v328, %v479
    %v481 = vpop.f32.mrf.mxu0
    %v482 = vpop.f32.mrf.mxu0
    %v483 = vadd.f32 %v333, %v482
    %v484 = vpop.f32.mrf.mxu0
    %485 = vmatprep.mubr.bf16.mxu0 0
    %486 = vmatmul.mubr.bf16.gmra.mxu0 %v402
    %v487 = vpop.f32.mrf.mxu0
    %v488 = vadd.f32 %v338, %v487
    %v489 = vpop.f32.mrf.mxu0
    %v490 = vpop.f32.mrf.mxu0
    %v491 = vadd.f32 %v343, %v490
    %v492 = vpop.f32.mrf.mxu0
    %493 = vmatprep.mubr.bf16.mxu0 0
    %494 = vmatmul.mubr.bf16.gmra.mxu0 %v403
    %v495 = vpop.f32.mrf.mxu0
    %v496 = vadd.f32 %v348, %v495
    %v497 = vpop.f32.mrf.mxu0
    %v498 = vpop.f32.mrf.mxu0
    %v499 = vadd.f32 %v353, %v498
    %v500 = vpop.f32.mrf.mxu0
    %501 = vmatprep.mubr.bf16.mxu0 0
    %502 = vmatmul.mubr.bf16.gmra.mxu0 %v404
    %v503 = vpop.f32.mrf.mxu0
    %v504 = vadd.f32 %v358, %v503
    %v505 = vpop.f32.mrf.mxu0
    %v506 = vpop.f32.mrf.mxu0
    %v507 = vadd.f32 %v363, %v506
    %v508 = vpop.f32.mrf.mxu0
    %509 = vdwg.mxu0
    %v510 = vmax.f32 %v448, 0.0
    %v511 = vmax.f32 %v451, 0.0
    %v512 = vmax.f32 %v456, 0.0
    %v513 = vmax.f32 %v459, 0.0
    %v514 = vmax.f32 %v464, 0.0
    %v515 = vmax.f32 %v467, 0.0
    %v516 = vmax.f32 %v472, 0.0
    %v517 = vmax.f32 %v475, 0.0
    %v518 = vmax.f32 %v480, 0.0
    %v519 = vmax.f32 %v483, 0.0
    %v520 = vmax.f32 %v488, 0.0
    %v521 = vmax.f32 %v491, 0.0
    %v522 = vmax.f32 %v496, 0.0
    %v523 = vmax.f32 %v499, 0.0
    %v524 = vmax.f32 %v504, 0.0
    %v525 = vmax.f32 %v507, 0.0
    %vm526 = vcmp.ne.f32.partialorder %v448, %v448
    %vm527 = vcmp.ne.f32.partialorder %v451, %v451
    %vm528 = vcmp.ne.f32.partialorder %v456, %v456
    %vm529 = vcmp.ne.f32.partialorder %v459, %v459
    %vm530 = vcmp.ne.f32.partialorder %v464, %v464
    %vm531 = vcmp.ne.f32.partialorder %v467, %v467
    %vm532 = vcmp.ne.f32.partialorder %v472, %v472
    %vm533 = vcmp.ne.f32.partialorder %v475, %v475
    %vm534 = vcmp.ne.f32.partialorder %v480, %v480
    %vm535 = vcmp.ne.f32.partialorder %v483, %v483
    %vm536 = vcmp.ne.f32.partialorder %v488, %v488
    %vm537 = vcmp.ne.f32.partialorder %v491, %v491
    %vm538 = vcmp.ne.f32.partialorder %v496, %v496
    %vm539 = vcmp.ne.f32.partialorder %v499, %v499
    %vm540 = vcmp.ne.f32.partialorder %v504, %v504
    %vm541 = vcmp.ne.f32.partialorder %v507, %v507
    %v542 = vadd.f32 %v448, 0.0
    %v543 = vadd.f32 %v451, 0.0
    %v544 = vadd.f32 %v456, 0.0
    %v545 = vadd.f32 %v459, 0.0
    %v546 = vadd.f32 %v464, 0.0
    %v547 = vadd.f32 %v467, 0.0
    %v548 = vadd.f32 %v472, 0.0
    %v549 = vadd.f32 %v475, 0.0
    %v550 = vadd.f32 %v480, 0.0
    %v551 = vadd.f32 %v483, 0.0
    %v552 = vadd.f32 %v488, 0.0
    %v553 = vadd.f32 %v491, 0.0
    %v554 = vadd.f32 %v496, 0.0
    %v555 = vadd.f32 %v499, 0.0
    %v556 = vadd.f32 %v504, 0.0
    %v557 = vadd.f32 %v507, 0.0
    %v558 = vand.u32 2147483647, %v448
    %v559 = vand.u32 2147483647, %v451
    %v560 = vand.u32 2147483647, %v456
    %v561 = vand.u32 2147483647, %v459
    %v562 = vand.u32 2147483647, %v464
    %v563 = vand.u32 2147483647, %v467
    %v564 = vand.u32 2147483647, %v472
    %v565 = vand.u32 2147483647, %v475
    %v566 = vand.u32 2147483647, %v480
    %v567 = vand.u32 2147483647, %v483
    %v568 = vand.u32 2147483647, %v488
    %v569 = vand.u32 2147483647, %v491
    %v570 = vand.u32 2147483647, %v496
    %v571 = vand.u32 2147483647, %v499
    %v572 = vand.u32 2147483647, %v504
    %v573 = vand.u32 2147483647, %v507
    %v574 = vsub.f32 0.0, %v558
    %v575 = vsub.f32 0.0, %v559
    %v576 = vsub.f32 0.0, %v560
    %v577 = vsub.f32 0.0, %v561
    %v578 = vsub.f32 0.0, %v562
    %v579 = vsub.f32 0.0, %v563
    %v580 = vsub.f32 0.0, %v564
    %v581 = vsub.f32 0.0, %v565
    %v582 = vsub.f32 0.0, %v566
    %v583 = vsub.f32 0.0, %v567
    %v584 = vsub.f32 0.0, %v568
    %v585 = vsub.f32 0.0, %v569
    %v586 = vsub.f32 0.0, %v570
    %v587 = vsub.f32 0.0, %v571
    %v588 = vsub.f32 0.0, %v572
    %v589 = vsub.f32 0.0, %v573
    %v590 = vmul.f32 %v574, 1.442695
    %v591 = vpow.pop %v590
    %v592 = vmul.f32 %v575, 1.442695
    %v593 = vpow.pop %v592
    %v594 = vmul.f32 %v576, 1.442695
    %v595 = vpow.pop %v594
    %v596 = vmul.f32 %v577, 1.442695
    %v597 = vpow.pop %v596
    %v598 = vmul.f32 %v578, 1.442695
    %v599 = vpow.pop %v598
    %v600 = vmul.f32 %v579, 1.442695
    %v601 = vpow.pop %v600
    %v602 = vmul.f32 %v580, 1.442695
    %v603 = vpow.pop %v602
    %v604 = vmul.f32 %v581, 1.442695
    %v605 = vpow.pop %v604
    %v606 = vmul.f32 %v582, 1.442695
    %v607 = vpow.pop %v606
    %v608 = vmul.f32 %v583, 1.442695
    %v609 = vpow.pop %v608
    %v610 = vmul.f32 %v584, 1.442695
    %v611 = vpow.pop %v610
    %v612 = vmul.f32 %v585, 1.442695
    %v613 = vpow.pop %v612
    %v614 = vmul.f32 %v586, 1.442695
    %v615 = vpow.pop %v614
    %v616 = vmul.f32 %v587, 1.442695
    %v617 = vpow.pop %v616
    %v618 = vmul.f32 %v588, 1.442695
    %v619 = vpow.pop %v618
    %v620 = vmul.f32 %v589, 1.442695
    %v621 = vpow.pop %v620
    %v622 = vadd.f32 %v591, 1.0
    %v623 = vlog2.pop %v622
    %v624 = vmul.f32 %v623, 0.6931472
    %v625 = vmul.f32 -0.5, %v591
    %v626 = vadd.f32 %v625, 1.0
    %v627 = vmul.f32 %v626, %v591
    %v628 = vand.u32 2147483647, %v591
    %vm629 = vcmp.lt.f32.partialorder %v628, 0.0004427343
    %v630 = vsel %vm629, %v627, %v624
    %v631 = vadd.f32 %v593, 1.0
    %v632 = vlog2.pop %v631
    %v633 = vmul.f32 %v632, 0.6931472
    %v634 = vmul.f32 -0.5, %v593
    %v635 = vadd.f32 %v634, 1.0
    %v636 = vmul.f32 %v635, %v593
    %v637 = vand.u32 2147483647, %v593
    %vm638 = vcmp.lt.f32.partialorder %v637, 0.0004427343
    %v639 = vsel %vm638, %v636, %v633
    %v640 = vadd.f32 %v595, 1.0
    %v641 = vlog2.pop %v640
    %v642 = vmul.f32 %v641, 0.6931472
    %v643 = vmul.f32 -0.5, %v595
    %v644 = vadd.f32 %v643, 1.0
    %v645 = vmul.f32 %v644, %v595
    %v646 = vand.u32 2147483647, %v595
    %vm647 = vcmp.lt.f32.partialorder %v646, 0.0004427343
    %v648 = vsel %vm647, %v645, %v642
    %v649 = vadd.f32 %v597, 1.0
    %v650 = vlog2.pop %v649
    %v651 = vmul.f32 %v650, 0.6931472
    %v652 = vmul.f32 -0.5, %v597
    %v653 = vadd.f32 %v652, 1.0
    %v654 = vmul.f32 %v653, %v597
    %v655 = vand.u32 2147483647, %v597
    %vm656 = vcmp.lt.f32.partialorder %v655, 0.0004427343
    %v657 = vsel %vm656, %v654, %v651
    %v658 = vadd.f32 %v599, 1.0
    %v659 = vlog2.pop %v658
    %v660 = vmul.f32 %v659, 0.6931472
    %v661 = vmul.f32 -0.5, %v599
    %v662 = vadd.f32 %v661, 1.0
    %v663 = vmul.f32 %v662, %v599
    %v664 = vand.u32 2147483647, %v599
    %vm665 = vcmp.lt.f32.partialorder %v664, 0.0004427343
    %v666 = vsel %vm665, %v663, %v660
    %v667 = vadd.f32 %v601, 1.0
    %v668 = vlog2.pop %v667
    %v669 = vmul.f32 %v668, 0.6931472
    %v670 = vmul.f32 -0.5, %v601
    %v671 = vadd.f32 %v670, 1.0
    %v672 = vmul.f32 %v671, %v601
    %v673 = vand.u32 2147483647, %v601
    %vm674 = vcmp.lt.f32.partialorder %v673, 0.0004427343
    %v675 = vsel %vm674, %v672, %v669
    %v676 = vadd.f32 %v603, 1.0
    %v677 = vlog2.pop %v676
    %v678 = vmul.f32 %v677, 0.6931472
    %v679 = vmul.f32 -0.5, %v603
    %v680 = vadd.f32 %v679, 1.0
    %v681 = vmul.f32 %v680, %v603
    %v682 = vand.u32 2147483647, %v603
    %vm683 = vcmp.lt.f32.partialorder %v682, 0.0004427343
    %v684 = vsel %vm683, %v681, %v678
    %v685 = vadd.f32 %v605, 1.0
    %v686 = vlog2.pop %v685
    %v687 = vmul.f32 %v686, 0.6931472
    %v688 = vmul.f32 -0.5, %v605
    %v689 = vadd.f32 %v688, 1.0
    %v690 = vmul.f32 %v689, %v605
    %v691 = vand.u32 2147483647, %v605
    %vm692 = vcmp.lt.f32.partialorder %v691, 0.0004427343
    %v693 = vsel %vm692, %v690, %v687
    %v694 = vadd.f32 %v607, 1.0
    %v695 = vlog2.pop %v694
    %v696 = vmul.f32 %v695, 0.6931472
    %v697 = vmul.f32 -0.5, %v607
    %v698 = vadd.f32 %v697, 1.0
    %v699 = vmul.f32 %v698, %v607
    %v700 = vand.u32 2147483647, %v607
    %vm701 = vcmp.lt.f32.partialorder %v700, 0.0004427343
    %v702 = vsel %vm701, %v699, %v696
    %v703 = vadd.f32 %v609, 1.0
    %v704 = vlog2.pop %v703
    %v705 = vmul.f32 %v704, 0.6931472
    %v706 = vmul.f32 -0.5, %v609
    %v707 = vadd.f32 %v706, 1.0
    %v708 = vmul.f32 %v707, %v609
    %v709 = vand.u32 2147483647, %v609
    %vm710 = vcmp.lt.f32.partialorder %v709, 0.0004427343
    %v711 = vsel %vm710, %v708, %v705
    %v712 = vadd.f32 %v611, 1.0
    %v713 = vlog2.pop %v712
    %v714 = vmul.f32 %v713, 0.6931472
    %v715 = vmul.f32 -0.5, %v611
    %v716 = vadd.f32 %v715, 1.0
    %v717 = vmul.f32 %v716, %v611
    %v718 = vand.u32 2147483647, %v611
    %vm719 = vcmp.lt.f32.partialorder %v718, 0.0004427343
    %v720 = vsel %vm719, %v717, %v714
    %v721 = vadd.f32 %v613, 1.0
    %v722 = vlog2.pop %v721
    %v723 = vmul.f32 %v722, 0.6931472
    %v724 = vmul.f32 -0.5, %v613
    %v725 = vadd.f32 %v724, 1.0
    %v726 = vmul.f32 %v725, %v613
    %v727 = vand.u32 2147483647, %v613
    %vm728 = vcmp.lt.f32.partialorder %v727, 0.0004427343
    %v729 = vsel %vm728, %v726, %v723
    %v730 = vadd.f32 %v615, 1.0
    %v731 = vlog2.pop %v730
    %v732 = vmul.f32 %v731, 0.6931472
    %v733 = vmul.f32 -0.5, %v615
    %v734 = vadd.f32 %v733, 1.0
    %v735 = vmul.f32 %v734, %v615
    %v736 = vand.u32 2147483647, %v615
    %vm737 = vcmp.lt.f32.partialorder %v736, 0.0004427343
    %v738 = vsel %vm737, %v735, %v732
    %v739 = vadd.f32 %v617, 1.0
    %v740 = vlog2.pop %v739
    %v741 = vmul.f32 %v740, 0.6931472
    %v742 = vmul.f32 -0.5, %v617
    %v743 = vadd.f32 %v742, 1.0
    %v744 = vmul.f32 %v743, %v617
    %v745 = vand.u32 2147483647, %v617
    %vm746 = vcmp.lt.f32.partialorder %v745, 0.0004427343
    %v747 = vsel %vm746, %v744, %v741
    %v748 = vadd.f32 %v619, 1.0
    %v749 = vlog2.pop %v748
    %v750 = vmul.f32 %v749, 0.6931472
    %v751 = vmul.f32 -0.5, %v619
    %v752 = vadd.f32 %v751, 1.0
    %v753 = vmul.f32 %v752, %v619
    %v754 = vand.u32 2147483647, %v619
    %vm755 = vcmp.lt.f32.partialorder %v754, 0.0004427343
    %v756 = vsel %vm755, %v753, %v750
    %v757 = vadd.f32 %v621, 1.0
    %v758 = vlog2.pop %v757
    %v759 = vmul.f32 %v758, 0.6931472
    %v760 = vmul.f32 -0.5, %v621
    %v761 = vadd.f32 %v760, 1.0
    %v762 = vmul.f32 %v761, %v621
    %v763 = vand.u32 2147483647, %v621
    %vm764 = vcmp.lt.f32.partialorder %v763, 0.0004427343
    %v765 = vsel %vm764, %v762, %v759
    %v766 = vadd.f32 %v510, %v630
    %v767 = vadd.f32 %v511, %v639
    %v768 = vadd.f32 %v512, %v648
    %v769 = vadd.f32 %v513, %v657
    %v770 = vadd.f32 %v514, %v666
    %v771 = vadd.f32 %v515, %v675
    %v772 = vadd.f32 %v516, %v684
    %v773 = vadd.f32 %v517, %v693
    %v774 = vadd.f32 %v518, %v702
    %v775 = vadd.f32 %v519, %v711
    %v776 = vadd.f32 %v520, %v720
    %v777 = vadd.f32 %v521, %v729
    %v778 = vadd.f32 %v522, %v738
    %v779 = vadd.f32 %v523, %v747
    %v780 = vadd.f32 %v524, %v756
    %v781 = vadd.f32 %v525, %v765
    %v782 = vsel %vm526, %v542, %v766
    %v783 = vsel %vm527, %v543, %v767
    %v784 = vsel %vm528, %v544, %v768
    %v785 = vsel %vm529, %v545, %v769
    %v786 = vsel %vm530, %v546, %v770
    %v787 = vsel %vm531, %v547, %v771
    %v788 = vsel %vm532, %v548, %v772
    %v789 = vsel %vm533, %v549, %v773
    %v790 = vsel %vm534, %v550, %v774
    %v791 = vsel %vm535, %v551, %v775
    %v792 = vsel %vm536, %v552, %v776
    %v793 = vsel %vm537, %v553, %v777
    %v794 = vsel %vm538, %v554, %v778
    %v795 = vsel %vm539, %v555, %v779
    %v796 = vsel %vm540, %v556, %v780
    %v797 = vsel %vm541, %v557, %v781
    %s798 = scalar_lea.vmem %s0, 64
    %v799 = vld [vmem:[%s798] sm:$0xf]
    %v800 = vld [vmem:[%s798 + $0x4] sm:$0xf]
    %v801 = vld [vmem:[%s798 + $0x8] sm:$0xf]
    %v802 = vld [vmem:[%s798 + $0xc] sm:$0xf]
    %v803 = vld [vmem:[%s798 + $0x10] sm:$0xf]
    %v804 = vld [vmem:[%s798 + $0x14] sm:$0xf]
    %v805 = vld [vmem:[%s798 + $0x18] sm:$0xf]
    %v806 = vld [vmem:[%s798 + $0x1c] sm:$0xf]
    %v807 = vld [vmem:[%s798 + $0x20] sm:$0xf]
    %v808 = vld [vmem:[%s798 + $0x24] sm:$0xf]
    %v809 = vld [vmem:[%s798 + $0x28] sm:$0xf]
    %v810 = vld [vmem:[%s798 + $0x2c] sm:$0xf]
    %v811 = vld [vmem:[%s798 + $0x30] sm:$0xf]
    %v812 = vld [vmem:[%s798 + $0x34] sm:$0xf]
    %v813 = vld [vmem:[%s798 + $0x38] sm:$0xf]
    %v814 = vld [vmem:[%s798 + $0x3c] sm:$0xf]
    %v815 = vpack.c.bf16 %v783, %v782
    %v816 = vpack.c.bf16 %v785, %v784
    %v817 = vpack.c.bf16 %v787, %v786
    %v818 = vpack.c.bf16 %v789, %v788
    %v819 = vpack.c.bf16 %v791, %v790
    %v820 = vpack.c.bf16 %v793, %v792
    %v821 = vpack.c.bf16 %v795, %v794
    %v822 = vpack.c.bf16 %v797, %v796
    %s823 = scalar_lea.vmem %s1, 128
    %v824 = vld [vmem:[%s823] sm:$0xff]
    %v825 = vld [vmem:[%s823 + $0x8] sm:$0xff]
    %v826 = vld [vmem:[%s823 + $0x10] sm:$0xff]
    %v827 = vld [vmem:[%s823 + $0x18] sm:$0xff]
    %v828 = vld [vmem:[%s823 + $0x20] sm:$0xff]
    %v829 = vld [vmem:[%s823 + $0x28] sm:$0xff]
    %v830 = vld [vmem:[%s823 + $0x30] sm:$0xff]
    %v831 = vld [vmem:[%s823 + $0x38] sm:$0xff]
    %v832 = vld [vmem:[%s823 + $0x40] sm:$0xff]
    %v833 = vld [vmem:[%s823 + $0x48] sm:$0xff]
    %v834 = vld [vmem:[%s823 + $0x50] sm:$0xff]
    %v835 = vld [vmem:[%s823 + $0x58] sm:$0xff]
    %v836 = vld [vmem:[%s823 + $0x60] sm:$0xff]
    %v837 = vld [vmem:[%s823 + $0x68] sm:$0xff]
    %v838 = vld [vmem:[%s823 + $0x70] sm:$0xff]
    %v839 = vld [vmem:[%s823 + $0x78] sm:$0xff]
    %841 = vset.pattern.permute.xlu0 0
    %842 = vperm.xlu0 %841, %v824
    %v843 = vpop.permute.xlu0 %842
    %846 = vset.pattern.permute.xlu0 0
    %847 = vperm.xlu0 %846, %v825
    %v848 = vpop.permute.xlu0 %847
    %851 = vset.pattern.permute.xlu0 0
    %852 = vperm.xlu0 %851, %v826
    %v853 = vpop.permute.xlu0 %852
    %856 = vset.pattern.permute.xlu0 0
    %857 = vperm.xlu0 %856, %v827
    %v858 = vpop.permute.xlu0 %857
    %861 = vset.pattern.permute.xlu0 0
    %862 = vperm.xlu0 %861, %v828
    %v863 = vpop.permute.xlu0 %862
    %866 = vset.pattern.permute.xlu0 0
    %867 = vperm.xlu0 %866, %v829
    %v868 = vpop.permute.xlu0 %867
    %871 = vset.pattern.permute.xlu0 0
    %872 = vperm.xlu0 %871, %v830
    %v873 = vpop.permute.xlu0 %872
    %876 = vset.pattern.permute.xlu0 0
    %877 = vperm.xlu0 %876, %v831
    %v878 = vpop.permute.xlu0 %877
    %881 = vset.pattern.permute.xlu0 0
    %882 = vperm.xlu0 %881, %v832
    %v883 = vpop.permute.xlu0 %882
    %886 = vset.pattern.permute.xlu0 0
    %887 = vperm.xlu0 %886, %v833
    %v888 = vpop.permute.xlu0 %887
    %891 = vset.pattern.permute.xlu0 0
    %892 = vperm.xlu0 %891, %v834
    %v893 = vpop.permute.xlu0 %892
    %896 = vset.pattern.permute.xlu0 0
    %897 = vperm.xlu0 %896, %v835
    %v898 = vpop.permute.xlu0 %897
    %901 = vset.pattern.permute.xlu0 0
    %902 = vperm.xlu0 %901, %v836
    %v903 = vpop.permute.xlu0 %902
    %906 = vset.pattern.permute.xlu0 0
    %907 = vperm.xlu0 %906, %v837
    %v908 = vpop.permute.xlu0 %907
    %911 = vset.pattern.permute.xlu0 0
    %912 = vperm.xlu0 %911, %v838
    %v913 = vpop.permute.xlu0 %912
    %916 = vset.pattern.permute.xlu0 0
    %917 = vperm.xlu0 %916, %v839
    %v918 = vpop.permute.xlu0 %917
    %v936 = vunpack.c.l.b16 %v799
    %v937 = vunpack.c.l.b16 %v800
    %v938 = vunpack.c.l.b16 %v801
    %v939 = vunpack.c.l.b16 %v802
    %v940 = vunpack.c.l.b16 %v803
    %v941 = vunpack.c.l.b16 %v804
    %v942 = vunpack.c.l.b16 %v805
    %v943 = vunpack.c.l.b16 %v806
    %v944 = vunpack.c.l.b16 %v807
    %v945 = vunpack.c.l.b16 %v808
    %v946 = vunpack.c.l.b16 %v809
    %v947 = vunpack.c.l.b16 %v810
    %v948 = vunpack.c.l.b16 %v811
    %v949 = vunpack.c.l.b16 %v812
    %v950 = vunpack.c.l.b16 %v813
    %v951 = vunpack.c.l.b16 %v814
    %v952 = vpack.c.b16 %v937, %v936
    %v953 = vpack.c.b16 %v939, %v938
    %v954 = vpack.c.b16 %v941, %v940
    %v955 = vpack.c.b16 %v943, %v942
    %v956 = vpack.c.b16 %v945, %v944
    %v957 = vpack.c.b16 %v947, %v946
    %v958 = vpack.c.b16 %v949, %v948
    %v959 = vpack.c.b16 %v951, %v950
    %968 = vmatprep.subr.bf16.mxu0 0
    %969 = vmatpush1.bf16.msra.mxu0 %v822
    %970 = vmatprep.subr.bf16.mxu0 0
    %971 = vmatpush1.bf16.msra.mxu0 %v821
    %972 = vmatprep.subr.bf16.mxu0 0
    %973 = vmatpush1.bf16.msra.mxu0 %v820
    %974 = vmatprep.subr.bf16.mxu0 0
    %975 = vmatpush1.bf16.msra.mxu0 %v819
    %976 = vmatprep.subr.bf16.mxu0 0
    %977 = vmatpush1.bf16.msra.mxu0 %v818
    %978 = vmatprep.subr.bf16.mxu0 0
    %979 = vmatpush1.bf16.msra.mxu0 %v817
    %980 = vmatprep.subr.bf16.mxu0 0
    %981 = vmatpush1.bf16.msra.mxu0 %v816
    %982 = vmatprep.subr.bf16.mxu0 0
    %983 = vmatpush1.bf16.msra.mxu0 %v815
    %984 = vmatprep.subr.bf16.mxu0 0
    %985 = vmatpush2.bf16.msra.mxu0 0
    %986 = vmatprep.subr.bf16.mxu0 0
    %987 = vmatpush2.bf16.msra.mxu0 0
    %988 = vmatprep.subr.bf16.mxu0 0
    %989 = vmatpush2.bf16.msra.mxu0 0
    %990 = vmatprep.subr.bf16.mxu0 0
    %991 = vmatpush2.bf16.msra.mxu0 0
    %992 = vmatprep.subr.bf16.mxu0 0
    %993 = vmatpush2.bf16.msra.mxu0 0
    %994 = vmatprep.subr.bf16.mxu0 0
    %995 = vmatpush2.bf16.msra.mxu0 0
    %996 = vmatprep.subr.bf16.mxu0 0
    %997 = vmatpush2.bf16.msra.mxu0 0
    %998 = vmatprep.subr.bf16.mxu0 0
    %999 = vmatpush2.bf16.msra.mxu0 0
    %1000 = vmatprep.mubr.bf16.mxu0 0
    %1001 = vmatmul.mubr.bf16.gmra.mxu0 %v952
    %v1002 = vpop.f32.mrf.mxu0
    %v1003 = vadd.f32 %v843, %v1002
    %v1004 = vpop.f32.mrf.mxu0
    %v1005 = vpop.f32.mrf.mxu0
    %v1006 = vadd.f32 %v848, %v1005
    %v1007 = vpop.f32.mrf.mxu0
    %1008 = vmatprep.mubr.bf16.mxu0 0
    %1009 = vmatmul.mubr.bf16.gmra.mxu0 %v953
    %v1010 = vpop.f32.mrf.mxu0
    %v1011 = vadd.f32 %v853, %v1010
    %v1012 = vpop.f32.mrf.mxu0
    %v1013 = vpop.f32.mrf.mxu0
    %v1014 = vadd.f32 %v858, %v1013
    %v1015 = vpop.f32.mrf.mxu0
    %1016 = vmatprep.mubr.bf16.mxu0 0
    %1017 = vmatmul.mubr.bf16.gmra.mxu0 %v954
    %v1018 = vpop.f32.mrf.mxu0
    %v1019 = vadd.f32 %v863, %v1018
    %v1020 = vpop.f32.mrf.mxu0
    %v1021 = vpop.f32.mrf.mxu0
    %v1022 = vadd.f32 %v868, %v1021
    %v1023 = vpop.f32.mrf.mxu0
    %1024 = vmatprep.mubr.bf16.mxu0 0
    %1025 = vmatmul.mubr.bf16.gmra.mxu0 %v955
    %v1026 = vpop.f32.mrf.mxu0
    %v1027 = vadd.f32 %v873, %v1026
    %v1028 = vpop.f32.mrf.mxu0
    %v1029 = vpop.f32.mrf.mxu0
    %v1030 = vadd.f32 %v878, %v1029
    %v1031 = vpop.f32.mrf.mxu0
    %1032 = vmatprep.mubr.bf16.mxu0 0
    %1033 = vmatmul.mubr.bf16.gmra.mxu0 %v956
    %v1034 = vpop.f32.mrf.mxu0
    %v1035 = vadd.f32 %v883, %v1034
    %v1036 = vpop.f32.mrf.mxu0
    %v1037 = vpop.f32.mrf.mxu0
    %v1038 = vadd.f32 %v888, %v1037
    %v1039 = vpop.f32.mrf.mxu0
    %1040 = vmatprep.mubr.bf16.mxu0 0
    %1041 = vmatmul.mubr.bf16.gmra.mxu0 %v957
    %v1042 = vpop.f32.mrf.mxu0
    %v1043 = vadd.f32 %v893, %v1042
    %v1044 = vpop.f32.mrf.mxu0
    %v1045 = vpop.f32.mrf.mxu0
    %v1046 = vadd.f32 %v898, %v1045
    %v1047 = vpop.f32.mrf.mxu0
    %1048 = vmatprep.mubr.bf16.mxu0 0
    %1049 = vmatmul.mubr.bf16.gmra.mxu0 %v958
    %v1050 = vpop.f32.mrf.mxu0
    %v1051 = vadd.f32 %v903, %v1050
    %v1052 = vpop.f32.mrf.mxu0
    %v1053 = vpop.f32.mrf.mxu0
    %v1054 = vadd.f32 %v908, %v1053
    %v1055 = vpop.f32.mrf.mxu0
    %1056 = vmatprep.mubr.bf16.mxu0 0
    %1057 = vmatmul.mubr.bf16.gmra.mxu0 %v959
    %v1058 = vpop.f32.mrf.mxu0
    %v1059 = vadd.f32 %v913, %v1058
    %v1060 = vpop.f32.mrf.mxu0
    %v1061 = vpop.f32.mrf.mxu0
    %v1062 = vadd.f32 %v918, %v1061
    %v1063 = vpop.f32.mrf.mxu0
    %1064 = vdwg.mxu0
    %v1065 = vmax.f32 %v1003, 0.0
    %v1066 = vmax.f32 %v1006, 0.0
    %v1067 = vmax.f32 %v1011, 0.0
    %v1068 = vmax.f32 %v1014, 0.0
    %v1069 = vmax.f32 %v1019, 0.0
    %v1070 = vmax.f32 %v1022, 0.0
    %v1071 = vmax.f32 %v1027, 0.0
    %v1072 = vmax.f32 %v1030, 0.0
    %v1073 = vmax.f32 %v1035, 0.0
    %v1074 = vmax.f32 %v1038, 0.0
    %v1075 = vmax.f32 %v1043, 0.0
    %v1076 = vmax.f32 %v1046, 0.0
    %v1077 = vmax.f32 %v1051, 0.0
    %v1078 = vmax.f32 %v1054, 0.0
    %v1079 = vmax.f32 %v1059, 0.0
    %v1080 = vmax.f32 %v1062, 0.0
    %vm1081 = vcmp.ne.f32.partialorder %v1003, %v1003
    %vm1082 = vcmp.ne.f32.partialorder %v1006, %v1006
    %vm1083 = vcmp.ne.f32.partialorder %v1011, %v1011
    %vm1084 = vcmp.ne.f32.partialorder %v1014, %v1014
    %vm1085 = vcmp.ne.f32.partialorder %v1019, %v1019
    %vm1086 = vcmp.ne.f32.partialorder %v1022, %v1022
    %vm1087 = vcmp.ne.f32.partialorder %v1027, %v1027
    %vm1088 = vcmp.ne.f32.partialorder %v1030, %v1030
    %vm1089 = vcmp.ne.f32.partialorder %v1035, %v1035
    %vm1090 = vcmp.ne.f32.partialorder %v1038, %v1038
    %vm1091 = vcmp.ne.f32.partialorder %v1043, %v1043
    %vm1092 = vcmp.ne.f32.partialorder %v1046, %v1046
    %vm1093 = vcmp.ne.f32.partialorder %v1051, %v1051
    %vm1094 = vcmp.ne.f32.partialorder %v1054, %v1054
    %vm1095 = vcmp.ne.f32.partialorder %v1059, %v1059
    %vm1096 = vcmp.ne.f32.partialorder %v1062, %v1062
    %v1097 = vadd.f32 %v1003, 0.0
    %v1098 = vadd.f32 %v1006, 0.0
    %v1099 = vadd.f32 %v1011, 0.0
    %v1100 = vadd.f32 %v1014, 0.0
    %v1101 = vadd.f32 %v1019, 0.0
    %v1102 = vadd.f32 %v1022, 0.0
    %v1103 = vadd.f32 %v1027, 0.0
    %v1104 = vadd.f32 %v1030, 0.0
    %v1105 = vadd.f32 %v1035, 0.0
    %v1106 = vadd.f32 %v1038, 0.0
    %v1107 = vadd.f32 %v1043, 0.0
    %v1108 = vadd.f32 %v1046, 0.0
    %v1109 = vadd.f32 %v1051, 0.0
    %v1110 = vadd.f32 %v1054, 0.0
    %v1111 = vadd.f32 %v1059, 0.0
    %v1112 = vadd.f32 %v1062, 0.0
    %v1113 = vand.u32 2147483647, %v1003
    %v1114 = vand.u32 2147483647, %v1006
    %v1115 = vand.u32 2147483647, %v1011
    %v1116 = vand.u32 2147483647, %v1014
    %v1117 = vand.u32 2147483647, %v1019
    %v1118 = vand.u32 2147483647, %v1022
    %v1119 = vand.u32 2147483647, %v1027
    %v1120 = vand.u32 2147483647, %v1030
    %v1121 = vand.u32 2147483647, %v1035
    %v1122 = vand.u32 2147483647, %v1038
    %v1123 = vand.u32 2147483647, %v1043
    %v1124 = vand.u32 2147483647, %v1046
    %v1125 = vand.u32 2147483647, %v1051
    %v1126 = vand.u32 2147483647, %v1054
    %v1127 = vand.u32 2147483647, %v1059
    %v1128 = vand.u32 2147483647, %v1062
    %v1129 = vsub.f32 0.0, %v1113
    %v1130 = vsub.f32 0.0, %v1114
    %v1131 = vsub.f32 0.0, %v1115
    %v1132 = vsub.f32 0.0, %v1116
    %v1133 = vsub.f32 0.0, %v1117
    %v1134 = vsub.f32 0.0, %v1118
    %v1135 = vsub.f32 0.0, %v1119
    %v1136 = vsub.f32 0.0, %v1120
    %v1137 = vsub.f32 0.0, %v1121
    %v1138 = vsub.f32 0.0, %v1122
    %v1139 = vsub.f32 0.0, %v1123
    %v1140 = vsub.f32 0.0, %v1124
    %v1141 = vsub.f32 0.0, %v1125
    %v1142 = vsub.f32 0.0, %v1126
    %v1143 = vsub.f32 0.0, %v1127
    %v1144 = vsub.f32 0.0, %v1128
    %v1145 = vmul.f32 %v1129, 1.442695
    %v1146 = vpow.pop %v1145
    %v1147 = vmul.f32 %v1130, 1.442695
    %v1148 = vpow.pop %v1147
    %v1149 = vmul.f32 %v1131, 1.442695
    %v1150 = vpow.pop %v1149
    %v1151 = vmul.f32 %v1132, 1.442695
    %v1152 = vpow.pop %v1151
    %v1153 = vmul.f32 %v1133, 1.442695
    %v1154 = vpow.pop %v1153
    %v1155 = vmul.f32 %v1134, 1.442695
    %v1156 = vpow.pop %v1155
    %v1157 = vmul.f32 %v1135, 1.442695
    %v1158 = vpow.pop %v1157
    %v1159 = vmul.f32 %v1136, 1.442695
    %v1160 = vpow.pop %v1159
    %v1161 = vmul.f32 %v1137, 1.442695
    %v1162 = vpow.pop %v1161
    %v1163 = vmul.f32 %v1138, 1.442695
    %v1164 = vpow.pop %v1163
    %v1165 = vmul.f32 %v1139, 1.442695
    %v1166 = vpow.pop %v1165
    %v1167 = vmul.f32 %v1140, 1.442695
    %v1168 = vpow.pop %v1167
    %v1169 = vmul.f32 %v1141, 1.442695
    %v1170 = vpow.pop %v1169
    %v1171 = vmul.f32 %v1142, 1.442695
    %v1172 = vpow.pop %v1171
    %v1173 = vmul.f32 %v1143, 1.442695
    %v1174 = vpow.pop %v1173
    %v1175 = vmul.f32 %v1144, 1.442695
    %v1176 = vpow.pop %v1175
    %v1177 = vadd.f32 %v1146, 1.0
    %v1178 = vlog2.pop %v1177
    %v1179 = vmul.f32 %v1178, 0.6931472
    %v1180 = vmul.f32 -0.5, %v1146
    %v1181 = vadd.f32 %v1180, 1.0
    %v1182 = vmul.f32 %v1181, %v1146
    %v1183 = vand.u32 2147483647, %v1146
    %vm1184 = vcmp.lt.f32.partialorder %v1183, 0.0004427343
    %v1185 = vsel %vm1184, %v1182, %v1179
    %v1186 = vadd.f32 %v1148, 1.0
    %v1187 = vlog2.pop %v1186
    %v1188 = vmul.f32 %v1187, 0.6931472
    %v1189 = vmul.f32 -0.5, %v1148
    %v1190 = vadd.f32 %v1189, 1.0
    %v1191 = vmul.f32 %v1190, %v1148
    %v1192 = vand.u32 2147483647, %v1148
    %vm1193 = vcmp.lt.f32.partialorder %v1192, 0.0004427343
    %v1194 = vsel %vm1193, %v1191, %v1188
    %v1195 = vadd.f32 %v1150, 1.0
    %v1196 = vlog2.pop %v1195
    %v1197 = vmul.f32 %v1196, 0.6931472
    %v1198 = vmul.f32 -0.5, %v1150
    %v1199 = vadd.f32 %v1198, 1.0
    %v1200 = vmul.f32 %v1199, %v1150
    %v1201 = vand.u32 2147483647, %v1150
    %vm1202 = vcmp.lt.f32.partialorder %v1201, 0.0004427343
    %v1203 = vsel %vm1202, %v1200, %v1197
    %v1204 = vadd.f32 %v1152, 1.0
    %v1205 = vlog2.pop %v1204
    %v1206 = vmul.f32 %v1205, 0.6931472
    %v1207 = vmul.f32 -0.5, %v1152
    %v1208 = vadd.f32 %v1207, 1.0
    %v1209 = vmul.f32 %v1208, %v1152
    %v1210 = vand.u32 2147483647, %v1152
    %vm1211 = vcmp.lt.f32.partialorder %v1210, 0.0004427343
    %v1212 = vsel %vm1211, %v1209, %v1206
    %v1213 = vadd.f32 %v1154, 1.0
    %v1214 = vlog2.pop %v1213
    %v1215 = vmul.f32 %v1214, 0.6931472
    %v1216 = vmul.f32 -0.5, %v1154
    %v1217 = vadd.f32 %v1216, 1.0
    %v1218 = vmul.f32 %v1217, %v1154
    %v1219 = vand.u32 2147483647, %v1154
    %vm1220 = vcmp.lt.f32.partialorder %v1219, 0.0004427343
    %v1221 = vsel %vm1220, %v1218, %v1215
    %v1222 = vadd.f32 %v1156, 1.0
    %v1223 = vlog2.pop %v1222
    %v1224 = vmul.f32 %v1223, 0.6931472
    %v1225 = vmul.f32 -0.5, %v1156
    %v1226 = vadd.f32 %v1225, 1.0
    %v1227 = vmul.f32 %v1226, %v1156
    %v1228 = vand.u32 2147483647, %v1156
    %vm1229 = vcmp.lt.f32.partialorder %v1228, 0.0004427343
    %v1230 = vsel %vm1229, %v1227, %v1224
    %v1231 = vadd.f32 %v1158, 1.0
    %v1232 = vlog2.pop %v1231
    %v1233 = vmul.f32 %v1232, 0.6931472
    %v1234 = vmul.f32 -0.5, %v1158
    %v1235 = vadd.f32 %v1234, 1.0
    %v1236 = vmul.f32 %v1235, %v1158
    %v1237 = vand.u32 2147483647, %v1158
    %vm1238 = vcmp.lt.f32.partialorder %v1237, 0.0004427343
    %v1239 = vsel %vm1238, %v1236, %v1233
    %v1240 = vadd.f32 %v1160, 1.0
    %v1241 = vlog2.pop %v1240
    %v1242 = vmul.f32 %v1241, 0.6931472
    %v1243 = vmul.f32 -0.5, %v1160
    %v1244 = vadd.f32 %v1243, 1.0
    %v1245 = vmul.f32 %v1244, %v1160
    %v1246 = vand.u32 2147483647, %v1160
    %vm1247 = vcmp.lt.f32.partialorder %v1246, 0.0004427343
    %v1248 = vsel %vm1247, %v1245, %v1242
    %v1249 = vadd.f32 %v1162, 1.0
    %v1250 = vlog2.pop %v1249
    %v1251 = vmul.f32 %v1250, 0.6931472
    %v1252 = vmul.f32 -0.5, %v1162
    %v1253 = vadd.f32 %v1252, 1.0
    %v1254 = vmul.f32 %v1253, %v1162
    %v1255 = vand.u32 2147483647, %v1162
    %vm1256 = vcmp.lt.f32.partialorder %v1255, 0.0004427343
    %v1257 = vsel %vm1256, %v1254, %v1251
    %v1258 = vadd.f32 %v1164, 1.0
    %v1259 = vlog2.pop %v1258
    %v1260 = vmul.f32 %v1259, 0.6931472
    %v1261 = vmul.f32 -0.5, %v1164
    %v1262 = vadd.f32 %v1261, 1.0
    %v1263 = vmul.f32 %v1262, %v1164
    %v1264 = vand.u32 2147483647, %v1164
    %vm1265 = vcmp.lt.f32.partialorder %v1264, 0.0004427343
    %v1266 = vsel %vm1265, %v1263, %v1260
    %v1267 = vadd.f32 %v1166, 1.0
    %v1268 = vlog2.pop %v1267
    %v1269 = vmul.f32 %v1268, 0.6931472
    %v1270 = vmul.f32 -0.5, %v1166
    %v1271 = vadd.f32 %v1270, 1.0
    %v1272 = vmul.f32 %v1271, %v1166
    %v1273 = vand.u32 2147483647, %v1166
    %vm1274 = vcmp.lt.f32.partialorder %v1273, 0.0004427343
    %v1275 = vsel %vm1274, %v1272, %v1269
    %v1276 = vadd.f32 %v1168, 1.0
    %v1277 = vlog2.pop %v1276
    %v1278 = vmul.f32 %v1277, 0.6931472
    %v1279 = vmul.f32 -0.5, %v1168
    %v1280 = vadd.f32 %v1279, 1.0
    %v1281 = vmul.f32 %v1280, %v1168
    %v1282 = vand.u32 2147483647, %v1168
    %vm1283 = vcmp.lt.f32.partialorder %v1282, 0.0004427343
    %v1284 = vsel %vm1283, %v1281, %v1278
    %v1285 = vadd.f32 %v1170, 1.0
    %v1286 = vlog2.pop %v1285
    %v1287 = vmul.f32 %v1286, 0.6931472
    %v1288 = vmul.f32 -0.5, %v1170
    %v1289 = vadd.f32 %v1288, 1.0
    %v1290 = vmul.f32 %v1289, %v1170
    %v1291 = vand.u32 2147483647, %v1170
    %vm1292 = vcmp.lt.f32.partialorder %v1291, 0.0004427343
    %v1293 = vsel %vm1292, %v1290, %v1287
    %v1294 = vadd.f32 %v1172, 1.0
    %v1295 = vlog2.pop %v1294
    %v1296 = vmul.f32 %v1295, 0.6931472
    %v1297 = vmul.f32 -0.5, %v1172
    %v1298 = vadd.f32 %v1297, 1.0
    %v1299 = vmul.f32 %v1298, %v1172
    %v1300 = vand.u32 2147483647, %v1172
    %vm1301 = vcmp.lt.f32.partialorder %v1300, 0.0004427343
    %v1302 = vsel %vm1301, %v1299, %v1296
    %v1303 = vadd.f32 %v1174, 1.0
    %v1304 = vlog2.pop %v1303
    %v1305 = vmul.f32 %v1304, 0.6931472
    %v1306 = vmul.f32 -0.5, %v1174
    %v1307 = vadd.f32 %v1306, 1.0
    %v1308 = vmul.f32 %v1307, %v1174
    %v1309 = vand.u32 2147483647, %v1174
    %vm1310 = vcmp.lt.f32.partialorder %v1309, 0.0004427343
    %v1311 = vsel %vm1310, %v1308, %v1305
    %v1312 = vadd.f32 %v1176, 1.0
    %v1313 = vlog2.pop %v1312
    %v1314 = vmul.f32 %v1313, 0.6931472
    %v1315 = vmul.f32 -0.5, %v1176
    %v1316 = vadd.f32 %v1315, 1.0
    %v1317 = vmul.f32 %v1316, %v1176
    %v1318 = vand.u32 2147483647, %v1176
    %vm1319 = vcmp.lt.f32.partialorder %v1318, 0.0004427343
    %v1320 = vsel %vm1319, %v1317, %v1314
    %v1321 = vadd.f32 %v1065, %v1185
    %v1322 = vadd.f32 %v1066, %v1194
    %v1323 = vadd.f32 %v1067, %v1203
    %v1324 = vadd.f32 %v1068, %v1212
    %v1325 = vadd.f32 %v1069, %v1221
    %v1326 = vadd.f32 %v1070, %v1230
    %v1327 = vadd.f32 %v1071, %v1239
    %v1328 = vadd.f32 %v1072, %v1248
    %v1329 = vadd.f32 %v1073, %v1257
    %v1330 = vadd.f32 %v1074, %v1266
    %v1331 = vadd.f32 %v1075, %v1275
    %v1332 = vadd.f32 %v1076, %v1284
    %v1333 = vadd.f32 %v1077, %v1293
    %v1334 = vadd.f32 %v1078, %v1302
    %v1335 = vadd.f32 %v1079, %v1311
    %v1336 = vadd.f32 %v1080, %v1320
    %v1337 = vsel %vm1081, %v1097, %v1321
    %v1338 = vsel %vm1082, %v1098, %v1322
    %v1339 = vsel %vm1083, %v1099, %v1323
    %v1340 = vsel %vm1084, %v1100, %v1324
    %v1341 = vsel %vm1085, %v1101, %v1325
    %v1342 = vsel %vm1086, %v1102, %v1326
    %v1343 = vsel %vm1087, %v1103, %v1327
    %v1344 = vsel %vm1088, %v1104, %v1328
    %v1345 = vsel %vm1089, %v1105, %v1329
    %v1346 = vsel %vm1090, %v1106, %v1330
    %v1347 = vsel %vm1091, %v1107, %v1331
    %v1348 = vsel %vm1092, %v1108, %v1332
    %v1349 = vsel %vm1093, %v1109, %v1333
    %v1350 = vsel %vm1094, %v1110, %v1334
    %v1351 = vsel %vm1095, %v1111, %v1335
    %v1352 = vsel %vm1096, %v1112, %v1336
    %s1353 = scalar_lea.vmem %s0, 128
    %v1354 = vld [vmem:[%s1353] sm:$0xf]
    %v1355 = vld [vmem:[%s1353 + $0x4] sm:$0xf]
    %v1356 = vld [vmem:[%s1353 + $0x8] sm:$0xf]
    %v1357 = vld [vmem:[%s1353 + $0xc] sm:$0xf]
    %v1358 = vld [vmem:[%s1353 + $0x10] sm:$0xf]
    %v1359 = vld [vmem:[%s1353 + $0x14] sm:$0xf]
    %v1360 = vld [vmem:[%s1353 + $0x18] sm:$0xf]
    %v1361 = vld [vmem:[%s1353 + $0x1c] sm:$0xf]
    %v1362 = vld [vmem:[%s1353 + $0x20] sm:$0xf]
    %v1363 = vld [vmem:[%s1353 + $0x24] sm:$0xf]
    %v1364 = vld [vmem:[%s1353 + $0x28] sm:$0xf]
    %v1365 = vld [vmem:[%s1353 + $0x2c] sm:$0xf]
    %v1366 = vld [vmem:[%s1353 + $0x30] sm:$0xf]
    %v1367 = vld [vmem:[%s1353 + $0x34] sm:$0xf]
    %v1368 = vld [vmem:[%s1353 + $0x38] sm:$0xf]
    %v1369 = vld [vmem:[%s1353 + $0x3c] sm:$0xf]
    %v1370 = vpack.c.bf16 %v1338, %v1337
    %v1371 = vpack.c.bf16 %v1340, %v1339
    %v1372 = vpack.c.bf16 %v1342, %v1341
    %v1373 = vpack.c.bf16 %v1344, %v1343
    %v1374 = vpack.c.bf16 %v1346, %v1345
    %v1375 = vpack.c.bf16 %v1348, %v1347
    %v1376 = vpack.c.bf16 %v1350, %v1349
    %v1377 = vpack.c.bf16 %v1352, %v1351
    %s1378 = scalar_lea.vmem %s1, 256
    %v1379 = vld [vmem:[%s1378] sm:$0xff]
    %v1380 = vld [vmem:[%s1378 + $0x8] sm:$0xff]
    %v1381 = vld [vmem:[%s1378 + $0x10] sm:$0xff]
    %v1382 = vld [vmem:[%s1378 + $0x18] sm:$0xff]
    %v1383 = vld [vmem:[%s1378 + $0x20] sm:$0xff]
    %v1384 = vld [vmem:[%s1378 + $0x28] sm:$0xff]
    %v1385 = vld [vmem:[%s1378 + $0x30] sm:$0xff]
    %v1386 = vld [vmem:[%s1378 + $0x38] sm:$0xff]
    %v1387 = vld [vmem:[%s1378 + $0x40] sm:$0xff]
    %v1388 = vld [vmem:[%s1378 + $0x48] sm:$0xff]
    %v1389 = vld [vmem:[%s1378 + $0x50] sm:$0xff]
    %v1390 = vld [vmem:[%s1378 + $0x58] sm:$0xff]
    %v1391 = vld [vmem:[%s1378 + $0x60] sm:$0xff]
    %v1392 = vld [vmem:[%s1378 + $0x68] sm:$0xff]
    %v1393 = vld [vmem:[%s1378 + $0x70] sm:$0xff]
    %v1394 = vld [vmem:[%s1378 + $0x78] sm:$0xff]
    %1396 = vset.pattern.permute.xlu0 0
    %1397 = vperm.xlu0 %1396, %v1379
    %v1398 = vpop.permute.xlu0 %1397
    %1401 = vset.pattern.permute.xlu0 0
    %1402 = vperm.xlu0 %1401, %v1380
    %v1403 = vpop.permute.xlu0 %1402
    %1405 = vset.pattern.permute.xlu0 0
    %1406 = vperm.xlu0 %1405, %v1381
    %v1407 = vpop.permute.xlu0 %1406
    %1409 = vset.pattern.permute.xlu0 0
    %1410 = vperm.xlu0 %1409, %v1382
    %v1411 = vpop.permute.xlu0 %1410
    %1413 = vset.pattern.permute.xlu0 0
    %1414 = vperm.xlu0 %1413, %v1383
    %v1415 = vpop.permute.xlu0 %1414
    %1417 = vset.pattern.permute.xlu0 0
    %1418 = vperm.xlu0 %1417, %v1384
    %v1419 = vpop.permute.xlu0 %1418
    %1421 = vset.pattern.permute.xlu0 0
    %1422 = vperm.xlu0 %1421, %v1385
    %v1423 = vpop.permute.xlu0 %1422
    %1425 = vset.pattern.permute.xlu0 0
    %1426 = vperm.xlu0 %1425, %v1386
    %v1427 = vpop.permute.xlu0 %1426
    %1429 = vset.pattern.permute.xlu0 0
    %1430 = vperm.xlu0 %1429, %v1387
    %v1431 = vpop.permute.xlu0 %1430
    %1433 = vset.pattern.permute.xlu0 0
    %1434 = vperm.xlu0 %1433, %v1388
    %v1435 = vpop.permute.xlu0 %1434
    %1437 = vset.pattern.permute.xlu0 0
    %1438 = vperm.xlu0 %1437, %v1389
    %v1439 = vpop.permute.xlu0 %1438
    %1441 = vset.pattern.permute.xlu0 0
    %1442 = vperm.xlu0 %1441, %v1390
    %v1443 = vpop.permute.xlu0 %1442
    %1445 = vset.pattern.permute.xlu0 0
    %1446 = vperm.xlu0 %1445, %v1391
    %v1447 = vpop.permute.xlu0 %1446
    %1449 = vset.pattern.permute.xlu0 0
    %1450 = vperm.xlu0 %1449, %v1392
    %v1451 = vpop.permute.xlu0 %1450
    %1453 = vset.pattern.permute.xlu0 0
    %1454 = vperm.xlu0 %1453, %v1393
    %v1455 = vpop.permute.xlu0 %1454
    %1457 = vset.pattern.permute.xlu0 0
    %1458 = vperm.xlu0 %1457, %v1394
    %v1459 = vpop.permute.xlu0 %1458
    %v1476 = vunpack.c.l.b16 %v1354
    %v1477 = vunpack.c.l.b16 %v1355
    %v1478 = vunpack.c.l.b16 %v1356
    %v1479 = vunpack.c.l.b16 %v1357
    %v1480 = vunpack.c.l.b16 %v1358
    %v1481 = vunpack.c.l.b16 %v1359
    %v1482 = vunpack.c.l.b16 %v1360
    %v1483 = vunpack.c.l.b16 %v1361
    %v1484 = vunpack.c.l.b16 %v1362
    %v1485 = vunpack.c.l.b16 %v1363
    %v1486 = vunpack.c.l.b16 %v1364
    %v1487 = vunpack.c.l.b16 %v1365
    %v1488 = vunpack.c.l.b16 %v1366
    %v1489 = vunpack.c.l.b16 %v1367
    %v1490 = vunpack.c.l.b16 %v1368
    %v1491 = vunpack.c.l.b16 %v1369
    %v1492 = vpack.c.b16 %v1477, %v1476
    %v1493 = vpack.c.b16 %v1479, %v1478
    %v1494 = vpack.c.b16 %v1481, %v1480
    %v1495 = vpack.c.b16 %v1483, %v1482
    %v1496 = vpack.c.b16 %v1485, %v1484
    %v1497 = vpack.c.b16 %v1487, %v1486
    %v1498 = vpack.c.b16 %v1489, %v1488
    %v1499 = vpack.c.b16 %v1491, %v1490
    %1508 = vmatprep.subr.bf16.mxu0 0
    %1509 = vmatpush1.bf16.msra.mxu0 %v1377
    %1510 = vmatprep.subr.bf16.mxu0 0
    %1511 = vmatpush1.bf16.msra.mxu0 %v1376
    %1512 = vmatprep.subr.bf16.mxu0 0
    %1513 = vmatpush1.bf16.msra.mxu0 %v1375
    %1514 = vmatprep.subr.bf16.mxu0 0
    %1515 = vmatpush1.bf16.msra.mxu0 %v1374
    %1516 = vmatprep.subr.bf16.mxu0 0
    %1517 = vmatpush1.bf16.msra.mxu0 %v1373
    %1518 = vmatprep.subr.bf16.mxu0 0
    %1519 = vmatpush1.bf16.msra.mxu0 %v1372
    %1520 = vmatprep.subr.bf16.mxu0 0
    %1521 = vmatpush1.bf16.msra.mxu0 %v1371
    %1522 = vmatprep.subr.bf16.mxu0 0
    %1523 = vmatpush1.bf16.msra.mxu0 %v1370
    %1524 = vmatprep.subr.bf16.mxu0 0
    %1525 = vmatpush2.bf16.msra.mxu0 0
    %1526 = vmatprep.subr.bf16.mxu0 0
    %1527 = vmatpush2.bf16.msra.mxu0 0
    %1528 = vmatprep.subr.bf16.mxu0 0
    %1529 = vmatpush2.bf16.msra.mxu0 0
    %1530 = vmatprep.subr.bf16.mxu0 0
    %1531 = vmatpush2.bf16.msra.mxu0 0
    %1532 = vmatprep.subr.bf16.mxu0 0
    %1533 = vmatpush2.bf16.msra.mxu0 0
    %1534 = vmatprep.subr.bf16.mxu0 0
    %1535 = vmatpush2.bf16.msra.mxu0 0
    %1536 = vmatprep.subr.bf16.mxu0 0
    %1537 = vmatpush2.bf16.msra.mxu0 0
    %1538 = vmatprep.subr.bf16.mxu0 0
    %1539 = vmatpush2.bf16.msra.mxu0 0
    %1540 = vmatprep.mubr.bf16.mxu0 0
    %1541 = vmatmul.mubr.bf16.gmra.mxu0 %v1492
    %v1542 = vpop.f32.mrf.mxu0
    %v1543 = vadd.f32 %v1398, %v1542
    %v1544 = vpop.f32.mrf.mxu0
    %v1545 = vpop.f32.mrf.mxu0
    %v1546 = vpop.f32.mrf.mxu0
    %1547 = vmatprep.mubr.bf16.mxu0 0
    %1548 = vmatmul.mubr.bf16.gmra.mxu0 %v1493
    %v1549 = vpop.f32.mrf.mxu0
    %v1550 = vpop.f32.mrf.mxu0
    %v1551 = vpop.f32.mrf.mxu0
    %v1552 = vpop.f32.mrf.mxu0
    %1553 = vmatprep.mubr.bf16.mxu0 0
    %1554 = vmatmul.mubr.bf16.gmra.mxu0 %v1494
    %v1555 = vpop.f32.mrf.mxu0
    %v1556 = vpop.f32.mrf.mxu0
    %v1557 = vpop.f32.mrf.mxu0
    %v1558 = vpop.f32.mrf.mxu0
    %1559 = vmatprep.mubr.bf16.mxu0 0
    %1560 = vmatmul.mubr.bf16.gmra.mxu0 %v1495
    %v1561 = vpop.f32.mrf.mxu0
    %v1562 = vpop.f32.mrf.mxu0
    %v1563 = vpop.f32.mrf.mxu0
    %v1564 = vpop.f32.mrf.mxu0
    %1565 = vmatprep.mubr.bf16.mxu0 0
    %1566 = vmatmul.mubr.bf16.gmra.mxu0 %v1496
    %v1567 = vpop.f32.mrf.mxu0
    %v1568 = vpop.f32.mrf.mxu0
    %v1569 = vpop.f32.mrf.mxu0
    %v1570 = vpop.f32.mrf.mxu0
    %1571 = vmatprep.mubr.bf16.mxu0 0
    %1572 = vmatmul.mubr.bf16.gmra.mxu0 %v1497
    %v1573 = vpop.f32.mrf.mxu0
    %v1574 = vpop.f32.mrf.mxu0
    %v1575 = vpop.f32.mrf.mxu0
    %v1576 = vpop.f32.mrf.mxu0
    %1577 = vmatprep.mubr.bf16.mxu0 0
    %1578 = vmatmul.mubr.bf16.gmra.mxu0 %v1498
    %v1579 = vpop.f32.mrf.mxu0
    %v1580 = vpop.f32.mrf.mxu0
    %v1581 = vpop.f32.mrf.mxu0
    %v1582 = vpop.f32.mrf.mxu0
    %1583 = vmatprep.mubr.bf16.mxu0 0
    %1584 = vmatmul.mubr.bf16.gmra.mxu0 %v1499
    %v1585 = vpop.f32.mrf.mxu0
    %v1586 = vpop.f32.mrf.mxu0
    %v1587 = vpop.f32.mrf.mxu0
    %v1588 = vpop.f32.mrf.mxu0
    %1589 = vdwg.mxu0
    %1590 = vst [vmem:[#allocation2] sm:$0x1] %v1543
    // Predicated region
    $region22: #{_node_rhs_batch.1} parent=1 // pred_check
      _
    $region23: #{_node_rhs_batch.1} parent=1 // pred_check_branch
      %1592 = sbr.rel (0) target = $region25
    $region24: #{_node_rhs_batch.1} parent=1 // pred_region
      %s1594 = ssub.s32 16, 16
      %1595 = vsyncadd [#allocation3], %s1594
      %s1597 = sshll.u32 [#allocation2], 4
      %s1598 = int_to_ptr.vmem [resolvable:$true] %s1597
      %1600 = dma.vmem_to_hbm [thread:$0]  %s1598, 16, %s5, [#allocation3]
    $region25: #{_node_rhs_batch.1} parent=1 // pred_fallthru
      _
    // Predicated region
    $region26: #{_node_rhs_batch.1} parent=1 // pred_check
      _
    $region27: #{_node_rhs_batch.1} parent=1 // pred_check_branch
      %1602 = sbr.rel (0) target = $region29
    $region28: #{_node_rhs_batch.1} parent=1 // pred_region
      %1603 = dma.done [#allocation3], 16
    $region29: #{_node_rhs_batch.1} parent=1 // pred_fallthru
      _
    %1604 = vsyncpa [#allocation3], 1

</llo_original>
